<compile_context>
chip_gen: v5e
topology: v5e:2x2
jax: 0.10.0
libtpu: 0.0.40
codegen_flags: <defaults>
</compile_context>

<pallas_src>
import functools

import jax
import jax.numpy as jnp
import numpy as np
from jax.experimental import pallas as pl
from jax.experimental.pallas import tpu as pltpu


# ----------------------------------------------------------------------------
# Pallas kernel: one time step of the recurrent decoder, all batches at once.
# ----------------------------------------------------------------------------
def decoder_kernel(
    ins_ref,      # (B*N, n_in)   current-step inputs (per-t block), f32
    R_ref,        # (E, N)        rel_rec   (shared across batch), compute dtype
    S_ref,        # (E, N)        rel_send
    RT_ref,       # (N, E)        rel_rec^T
    rt_ref,       # (B*E, Ks*H)   rel_type gain, 1/(norm*n_in) folded in, f32
    W1f_ref,      # (H, 2*Ks*H)   fused msg_fc1: [receiver half | sender half]
    b1_ref,       # (1, Ks*H)
    W2_ref,       # (Ks*H, Ks*H)  block-diag msg_fc2
    b2_ref,       # (1, Ks*H)
    Whid_ref,     # (H, 3H)       fused hidden_r|hidden_i|hidden_n (no bias)
    Win_ref,      # (n_in, 3H)    fused input_r|input_i|input_n
    bin_ref,      # (1, 3H)
    Wo1_ref,      # (H, H)
    bo1_ref,      # (1, H)
    Wo2_ref,      # (H, H)
    bo2_ref,      # (1, H)
    Wo3_ref,      # (H, n_in)
    bo3_ref,      # (1, n_in)
    out_ref,      # (B*N, n_in)   per-t output block, f32
    hidden_ref,   # VMEM scratch (B*N, H) f32, carried across the time grid
    pre_ref,      # VMEM scratch (B*E, Ks*H) f32, per-edge pre-activations
    agg_ref,      # VMEM scratch (B*N, H) f32, aggregated node messages
    *, B, N, E, H, KsH,
):
    t = pl.program_id(0)

    # torch: hidden = zeros(...) at the start of the sequence.
    @pl.when(t == 0)
    def _():
        hidden_ref[...] = jnp.zeros_like(hidden_ref)

    cdt = W1f_ref.dtype                       # matmul-operand (MXU) dtype
    dot = functools.partial(jnp.dot, preferred_element_type=jnp.float32)

    ins = ins_ref[...]                        # (B*N, n_in) f32
    hidden = hidden_ref[...]                  # (B*N, H)    f32

    # --- fused msg_fc1 at node level (recv/send halves + edge types on lanes) ----
    nAB = dot(hidden.astype(cdt), W1f_ref[...])        # (B*N, 2*Ks*H) f32

    # --- edge gather: shared one-hot incidence, applied per batch (static unroll) --
    for b in range(B):
        blk = nAB[b * N:(b + 1) * N, :]                # (N, 2*Ks*H)
        hA = blk[:, :KsH].astype(cdt)                  # receiver projection
        hB = blk[:, KsH:].astype(cdt)                  # sender projection
        pre_ref[b * E:(b + 1) * E, :] = dot(R_ref[...], hA) + dot(S_ref[...], hB)

    m1 = jnp.tanh(pre_ref[...] + b1_ref[...])                          # (B*E, Ks*H)
    m2 = jnp.tanh(dot(m1.astype(cdt), W2_ref[...]) + b2_ref[...])      # (B*E, Ks*H)
    weighted = m2 * rt_ref[...]               # rel_type / (norm * n_in), f32 (VPU)

    # --- sum over edge types: VPU lane-block add (Ks is tiny) --------------------
    msgs = weighted[:, :H]
    for k in range(1, KsH // H):
        msgs = msgs + weighted[:, k * H:(k + 1) * H]   # (B*E, H)

    # --- node scatter: rel_rec^T aggregation, per batch --------------------------
    for b in range(B):
        msgs_b = msgs[b * E:(b + 1) * E, :].astype(cdt)
        agg_ref[b * N:(b + 1) * N, :] = dot(RT_ref[...], msgs_b)
    agg = agg_ref[...]                        # (B*N, H) f32

    # --- fused GRU-style update (dropout p=0 -> identity); gate math in f32 ------
    xg = dot(ins.astype(cdt), Win_ref[...]) + bin_ref[...]     # (B*N, 3H)
    hg = dot(agg.astype(cdt), Whid_ref[...])                   # (B*N, 3H)
    r = jax.nn.sigmoid(xg[:, :H] + hg[:, :H])
    i_g = jax.nn.sigmoid(xg[:, H:2 * H] + hg[:, H:2 * H])
    n_g = jnp.tanh(xg[:, 2 * H:] + r * hg[:, 2 * H:])
    new_hidden = (1.0 - i_g) * n_g + i_g * hidden
    hidden_ref[...] = new_hidden

    # --- output MLP + residual ----------------------------------------------------
    p1 = jax.nn.relu(dot(new_hidden.astype(cdt), Wo1_ref[...]) + bo1_ref[...])
    p2 = jax.nn.relu(dot(p1.astype(cdt), Wo2_ref[...]) + bo2_ref[...])
    p3 = dot(p2.astype(cdt), Wo3_ref[...]) + bo3_ref[...]
    out_ref[...] = ins + p3


# ----------------------------------------------------------------------------
# Wrapper: whole recurrent forward pass (pred_steps=1 teacher-forcing path).
# ----------------------------------------------------------------------------
def pallas_forward(data, rel_type, rel_rec, rel_send, p, skip_first=True,
                   compute_dtype=jnp.bfloat16):
    B, N, T, n_in = data.shape
    E = rel_rec.shape[0]
    H = p["Whid"].shape[-1]
    K = p["W1"].shape[0]

    start_idx = 1 if skip_first else 0
    Ks = K - start_idx
    norm = float(Ks)                       # == K-1 if skip_first else K
    BN, BE = B * N, B * E
    f32 = jnp.float32
    cdt = compute_dtype

    # [B, N, T, n_in] -> time-major with batch folded into rows: [T, B*N, n_in]
    inputs = jnp.transpose(data, (2, 0, 1, 3)).reshape(T, BN, n_in).astype(f32)

    # Shared incidence matrices (applied per batch in-kernel; no kron(I_B, .) blow-up).
    R = rel_rec.astype(cdt)                # (E, N)
    S = rel_send.astype(cdt)               # (E, N)
    RT = rel_rec.T.astype(cdt)             # (N, E)

    # Fused msg_fc1: receiver half || sender half, edge types stacked on lanes.
    W1a = jnp.moveaxis(p["W1"][start_idx:, :H, :], 0, 1).reshape(H, Ks * H)
    W1b = jnp.moveaxis(p["W1"][start_idx:, H:, :], 0, 1).reshape(H, Ks * H)
    W1f = jnp.concatenate([W1a, W1b], axis=1).astype(cdt)              # (H, 2*Ks*H)
    b1 = p["b1"][start_idx:, 0, :].reshape(1, Ks * H).astype(f32)
    W2bd = jax.scipy.linalg.block_diag(
        *[p["W2"][k] for k in range(start_idx, K)]).astype(cdt)        # (Ks*H, Ks*H)
    b2 = p["b2"][start_idx:, 0, :].reshape(1, Ks * H).astype(f32)

    # rel_type -> lane-dense per-edge gain with 1/(norm*n_in) folded in
    # (torch divides all_msgs by norm and agg_msgs by inputs.size(2) == n_in).
    rt = rel_type[:, :, start_idx:].astype(f32)                        # (B, E, Ks)
    rt_wide = jnp.repeat(rt, H, axis=-1).reshape(BE, Ks * H)
    rt_wide = rt_wide * (1.0 / (norm * float(n_in)))

    # Fused GRU weights: [r | i | n] stacked on lanes.
    Whid_f = jnp.concatenate([p["Whid"][g] for g in range(3)], axis=1).astype(cdt)
    Win_f = jnp.concatenate([p["Win"][g] for g in range(3)], axis=1).astype(cdt)
    bin_f = jnp.concatenate([p["bin"][g] for g in range(3)], axis=1).astype(f32)

    operands = (
        inputs, R, S, RT, rt_wide,
        W1f, b1, W2bd, b2,
        Whid_f, Win_f, bin_f,
        p["Wo1"].astype(cdt), p["bo1"].astype(f32),
        p["Wo2"].astype(cdt), p["bo2"].astype(f32),
        p["Wo3"].astype(cdt), p["bo3"].astype(f32),
    )

    def whole(x):
        # Constant index map -> fetched into VMEM exactly once for the whole grid.
        return pl.BlockSpec(x.shape, lambda t, nd=x.ndim: (0,) * nd)

    # Inputs / outputs use per-timestep blocks (squeezed time dim); the small
    # per-step DMAs are hidden by the grid pipeline and residency stays minimal.
    in_specs = [pl.BlockSpec((None, BN, n_in), lambda t: (t, 0, 0))]
    in_specs += [whole(x) for x in operands[1:]]
    out_specs = pl.BlockSpec((None, BN, n_in), lambda t: (t, 0, 0))

    kernel = functools.partial(decoder_kernel, B=B, N=N, E=E, H=H, KsH=Ks * H)

    out = pl.pallas_call(
        kernel,
        grid=(T - 1,),
        in_specs=in_specs,
        out_specs=out_specs,
        out_shape=jax.ShapeDtypeStruct((T - 1, BN, n_in), f32),
        scratch_shapes=[
            pltpu.VMEM((BN, H), f32),        # hidden state carried across time
            pltpu.VMEM((BE, Ks * H), f32),   # per-edge pre-activations (all batches)
            pltpu.VMEM((BN, H), f32),        # aggregated node messages
        ],
        compiler_params=pltpu.CompilerParams(
            # Time axis carries the GRU recurrence -> must stay sequential.
            dimension_semantics=("arbitrary",),
            vmem_limit_bytes=32 * 1024 * 1024,
        ),
    )(*operands)

    # [T-1, B*N, n_in] -> torch output convention [B, N, T-1, n_in]
    return jnp.transpose(out.reshape(T - 1, B, N, n_in), (1, 2, 0, 3))


# ----------------------------------------------------------------------------
# Pure-JAX reference (mirror of the PyTorch forward) for correctness check.
# ----------------------------------------------------------------------------
def reference_forward(data, rel_type, rel_rec, rel_send, p, skip_first=True):
    B, N, T, n_in = data.shape
    H = p["Whid"].shape[-1]
    K = p["W1"].shape[0]
    start_idx = 1 if skip_first else 0
    norm = float(K) - 1.0 if skip_first else float(K)

    inputs = jnp.transpose(data, (0, 2, 1, 3))   # [B, T, N, n_in]
    hidden = jnp.zeros((B, N, H), jnp.float32)
    preds = []
    for step in range(T - 1):
        ins = inputs[:, step]
        receivers = jnp.einsum("en,bnh->beh", rel_rec, hidden)
        senders = jnp.einsum("en,bnh->beh", rel_send, hidden)
        pre_msg = jnp.concatenate([receivers, senders], axis=-1)
        all_msgs = jnp.zeros((B, rel_rec.shape[0], H), jnp.float32)
        for k in range(start_idx, K):
            msg = jnp.tanh(pre_msg @ p["W1"][k] + p["b1"][k])
            msg = jnp.tanh(msg @ p["W2"][k] + p["b2"][k])
            msg = msg * rel_type[:, :, k:k + 1]
            all_msgs = all_msgs + msg / norm
        agg = jnp.einsum("en,beh->bnh", rel_rec, all_msgs) / float(n_in)
        r = jax.nn.sigmoid(ins @ p["Win"][0] + p["bin"][0] + agg @ p["Whid"][0])
        i = jax.nn.sigmoid(ins @ p["Win"][1] + p["bin"][1] + agg @ p["Whid"][1])
        n = jnp.tanh(ins @ p["Win"][2] + p["bin"][2] + r * (agg @ p["Whid"][2]))
        hidden = (1.0 - i) * n + i * hidden
        pred = jax.nn.relu(hidden @ p["Wo1"] + p["bo1"])
        pred = jax.nn.relu(pred @ p["Wo2"] + p["bo2"])
        pred = pred @ p["Wo3"] + p["bo3"]
        preds.append(ins + pred)
    out = jnp.stack(preds, axis=1)               # [B, T-1, N, n_in]
    return jnp.transpose(out, (0, 2, 1, 3))


# ----------------------------------------------------------------------------
# Deterministic parameter init (shapes match the module's __init__).
# Linear weights are stored [in, out] (== torch weight transposed).
# ----------------------------------------------------------------------------
def init_params(key, n_in, n_hid, edge_types):
    keys = jax.random.split(key, 16)
    s = 0.1

    def w(k, shape):
        return jax.random.normal(k, shape, jnp.float32) * s

    return {
        "W1": w(keys[0], (edge_types, 2 * n_hid, n_hid)),
        "b1": w(keys[1], (edge_types, 1, n_hid)),
        "W2": w(keys[2], (edge_types, n_hid, n_hid)),
        "b2": w(keys[3], (edge_types, 1, n_hid)),
        "Whid": w(keys[4], (3, n_hid, n_hid)),           # hidden_r, hidden_i, hidden_n
        "Win": w(keys[5], (3, n_in, n_hid)),             # input_r, input_i, input_n
        "bin": w(keys[6], (3, 1, n_hid)),
        "Wo1": w(keys[7], (n_hid, n_hid)),
        "bo1": w(keys[8], (1, n_hid)),
        "Wo2": w(keys[9], (n_hid, n_hid)),
        "bo2": w(keys[10], (1, n_hid)),
        "Wo3": w(keys[11], (n_hid, n_in)),
        "bo3": w(keys[12], (1, n_in)),
    }


if __name__ == "__main__":
    # Small, forward-consistent shapes (N chosen so per-batch row blocks are
    # sublane-aligned: N=8 -> E=56, both multiples of 8).
    B, N, T = 2, 8, 8            # batch, num_atoms, time steps
    n_in, n_hid, edge_types = 4, 32, 3

    key = jax.random.PRNGKey(0)
    kd, kt, kp = jax.random.split(key, 3)

    # data: [B, num_atoms, T, n_in]  (torch forward transposes dims 1,2)
    data = jax.random.normal(kd, (B, N, T, n_in), jnp.float32)

    # rel_rec / rel_send: one-hot edge incidence for a fully-connected graph
    # without self-loops (standard NRI construction).
    off_diag = np.ones((N, N), dtype=np.float32) - np.eye(N, dtype=np.float32)
    send_idx, recv_idx = np.nonzero(off_diag)
    eye = np.eye(N, dtype=np.float32)
    rel_rec = jnp.asarray(eye[recv_idx])     # [E, N]
    rel_send = jnp.asarray(eye[send_idx])    # [E, N]
    E = rel_rec.shape[0]

    rel_type = jax.nn.softmax(
        jax.random.normal(kt, (B, E, edge_types), jnp.float32), axis=-1
    )

    params = init_params(kp, n_in, n_hid, edge_types)

    ref = reference_forward(data, rel_type, rel_rec, rel_send, params, skip_first=True)

    # 1) f32 MXU path: tight check of the structural refactor (fusions, incidence
    #    reordering, folded 1/(norm*n_in) gain).
    out32 = pallas_forward(data, rel_type, rel_rec, rel_send, params,
                           skip_first=True, compute_dtype=jnp.float32)
    out32 = jax.block_until_ready(out32)
    assert out32.shape == (B, N, T - 1, n_in), out32.shape
    err32 = float(jnp.max(jnp.abs(out32 - ref)))
    assert err32 < 1e-3, f"f32 kernel mismatch vs reference: {err32}"

    # 2) bf16-operand MXU path (default, v6e/v7x-oriented): looser tolerance covers
    #    bf16 rounding of matmul operands; hidden/gate math stays f32.
    outbf = pallas_forward(data, rel_type, rel_rec, rel_send, params,
                           skip_first=True, compute_dtype=jnp.bfloat16)
    outbf = jax.block_until_ready(outbf)
    errbf = float(jnp.max(jnp.abs(outbf - ref)))
    assert errbf < 5e-2, f"bf16 kernel mismatch vs reference: {errbf}"

    # TODO(synk): dropout (p=0 here), burn_in / dynamic_graph / pred_steps>1
    # branches are not exercised by the default forward path and are omitted.
    print("KERNEL_OK")
</pallas_src>

<mosaic_0001>
module attributes {stable_mosaic.version = 11 : i64} {
  func.func @decoder_kernel(%arg0: i32, %arg1: memref<1x16x4xf32, #tpu.memory_space<vmem>>, %arg2: memref<56x8xf32, #tpu.memory_space<vmem>>, %arg3: memref<56x8xf32, #tpu.memory_space<vmem>>, %arg4: memref<8x56xf32, #tpu.memory_space<vmem>>, %arg5: memref<112x64xf32, #tpu.memory_space<vmem>>, %arg6: memref<32x128xf32, #tpu.memory_space<vmem>>, %arg7: memref<1x64xf32, #tpu.memory_space<vmem>>, %arg8: memref<64x64xf32, #tpu.memory_space<vmem>>, %arg9: memref<1x64xf32, #tpu.memory_space<vmem>>, %arg10: memref<32x96xf32, #tpu.memory_space<vmem>>, %arg11: memref<4x96xf32, #tpu.memory_space<vmem>>, %arg12: memref<1x96xf32, #tpu.memory_space<vmem>>, %arg13: memref<32x32xf32, #tpu.memory_space<vmem>>, %arg14: memref<1x32xf32, #tpu.memory_space<vmem>>, %arg15: memref<32x32xf32, #tpu.memory_space<vmem>>, %arg16: memref<1x32xf32, #tpu.memory_space<vmem>>, %arg17: memref<32x4xf32, #tpu.memory_space<vmem>>, %arg18: memref<1x4xf32, #tpu.memory_space<vmem>>, %arg19: memref<1x16x4xf32, #tpu.memory_space<vmem>>, %arg20: memref<16x32xf32, #tpu.memory_space<vmem>>, %arg21: memref<112x64xf32, #tpu.memory_space<vmem>>, %arg22: memref<16x32xf32, #tpu.memory_space<vmem>>) attributes {dimension_semantics = [#tpu.dimension_semantics<arbitrary>], iteration_bounds = array<i64: 7>, scalar_prefetch = 0 : i64, scratch_operands = 3 : i64, tpu.core_type = #tpu.core_type<tc>, window_params = [{transform_indices = @transform_0, window_bounds = array<i64: 1, 16, 4>}, {pipeline_mode = #tpu.pipeline_mode<synchronous>, transform_indices = @transform_1, window_bounds = array<i64: 56, 8>}, {pipeline_mode = #tpu.pipeline_mode<synchronous>, transform_indices = @transform_2, window_bounds = array<i64: 56, 8>}, {pipeline_mode = #tpu.pipeline_mode<synchronous>, transform_indices = @transform_3, window_bounds = array<i64: 8, 56>}, {pipeline_mode = #tpu.pipeline_mode<synchronous>, transform_indices = @transform_4, window_bounds = array<i64: 112, 64>}, {pipeline_mode = #tpu.pipeline_mode<synchronous>, transform_indices = @transform_5, window_bounds = array<i64: 32, 128>}, {pipeline_mode = #tpu.pipeline_mode<synchronous>, transform_indices = @transform_6, window_bounds = array<i64: 1, 64>}, {pipeline_mode = #tpu.pipeline_mode<synchronous>, transform_indices = @transform_7, window_bounds = array<i64: 64, 64>}, {pipeline_mode = #tpu.pipeline_mode<synchronous>, transform_indices = @transform_8, window_bounds = array<i64: 1, 64>}, {pipeline_mode = #tpu.pipeline_mode<synchronous>, transform_indices = @transform_9, window_bounds = array<i64: 32, 96>}, {pipeline_mode = #tpu.pipeline_mode<synchronous>, transform_indices = @transform_10, window_bounds = array<i64: 4, 96>}, {pipeline_mode = #tpu.pipeline_mode<synchronous>, transform_indices = @transform_11, window_bounds = array<i64: 1, 96>}, {pipeline_mode = #tpu.pipeline_mode<synchronous>, transform_indices = @transform_12, window_bounds = array<i64: 32, 32>}, {pipeline_mode = #tpu.pipeline_mode<synchronous>, transform_indices = @transform_13, window_bounds = array<i64: 1, 32>}, {pipeline_mode = #tpu.pipeline_mode<synchronous>, transform_indices = @transform_14, window_bounds = array<i64: 32, 32>}, {pipeline_mode = #tpu.pipeline_mode<synchronous>, transform_indices = @transform_15, window_bounds = array<i64: 1, 32>}, {pipeline_mode = #tpu.pipeline_mode<synchronous>, transform_indices = @transform_16, window_bounds = array<i64: 32, 4>}, {pipeline_mode = #tpu.pipeline_mode<synchronous>, transform_indices = @transform_17, window_bounds = array<i64: 1, 4>}, {transform_indices = @transform_18, window_bounds = array<i64: 1, 16, 4>}]} {
    %c0_i32 = arith.constant 0 : i32
    %0 = arith.cmpi eq, %arg0, %c0_i32 : i32
    %1 = arith.extui %0 : i1 to i32
    %c0_i32_0 = arith.constant 0 : i32
    %2 = arith.cmpi ne, %1, %c0_i32_0 : i32
    scf.if %2 {
      %cst_77 = arith.constant 0.000000e+00 : f32
      %108 = vector.broadcast %cst_77 : f32 to vector<16x32xf32>
      %c0_78 = arith.constant 0 : index
      %c0_79 = arith.constant 0 : index
      %109 = vector.load %arg20[%c0_78, %c0_79] : memref<16x32xf32, #tpu.memory_space<vmem>>, vector<16x32xf32>
      tpu.vector_store %arg20[%c0_78, %c0_79], %108 {strides = array<i32>} : memref<16x32xf32, #tpu.memory_space<vmem>>, vector<16x32xf32>,
    } else {
    }
    %c0 = arith.constant 0 : index
    %c0_1 = arith.constant 0 : index
    %c0_2 = arith.constant 0 : index
    %3 = vector.load %arg1[%c0, %c0_1, %c0_2] : memref<1x16x4xf32, #tpu.memory_space<vmem>>, vector<1x16x4xf32>
    %4 = vector.shape_cast %3 : vector<1x16x4xf32> to vector<16x4xf32>
    %c0_3 = arith.constant 0 : index
    %c0_4 = arith.constant 0 : index
    %5 = vector.load %arg20[%c0_3, %c0_4] : memref<16x32xf32, #tpu.memory_space<vmem>>, vector<16x32xf32>
    %c0_5 = arith.constant 0 : index
    %c0_6 = arith.constant 0 : index
    %6 = vector.load %arg6[%c0_5, %c0_6] : memref<32x128xf32, #tpu.memory_space<vmem>>, vector<32x128xf32>
    %cst = arith.constant dense<0.000000e+00> : vector<16x128xf32>
    %7 = tpu.matmul %5, %6, %cst {dimension_numbers = #tpu.dot_dimension_numbers<[1], [0], [0], [1], [0, 0, 1, 1], [], []>} : vector<16x32xf32>, vector<32x128xf32>, vector<16x128xf32> -> vector<16x128xf32>
    %8 = vector.extract_strided_slice %7 {offsets = [0, 0], sizes = [8, 128], strides = [1, 1]} : vector<16x128xf32> to vector<8x128xf32>
    %9 = vector.extract_strided_slice %8 {offsets = [0, 0], sizes = [8, 64], strides = [1, 1]} : vector<8x128xf32> to vector<8x64xf32>
    %10 = vector.extract_strided_slice %8 {offsets = [0, 64], sizes = [8, 64], strides = [1, 1]} : vector<8x128xf32> to vector<8x64xf32>
    %c0_7 = arith.constant 0 : index
    %c0_8 = arith.constant 0 : index
    %11 = vector.load %arg2[%c0_7, %c0_8] : memref<56x8xf32, #tpu.memory_space<vmem>>, vector<56x8xf32>
    %cst_9 = arith.constant dense<0.000000e+00> : vector<56x64xf32>
    %12 = tpu.matmul %11, %9, %cst_9 {dimension_numbers = #tpu.dot_dimension_numbers<[1], [0], [0], [1], [0, 0, 1, 1], [], []>} : vector<56x8xf32>, vector<8x64xf32>, vector<56x64xf32> -> vector<56x64xf32>
    %c0_10 = arith.constant 0 : index
    %c0_11 = arith.constant 0 : index
    %13 = vector.load %arg3[%c0_10, %c0_11] : memref<56x8xf32, #tpu.memory_space<vmem>>, vector<56x8xf32>
    %cst_12 = arith.constant dense<0.000000e+00> : vector<56x64xf32>
    %14 = tpu.matmul %13, %10, %cst_12 {dimension_numbers = #tpu.dot_dimension_numbers<[1], [0], [0], [1], [0, 0, 1, 1], [], []>} : vector<56x8xf32>, vector<8x64xf32>, vector<56x64xf32> -> vector<56x64xf32>
    %15 = arith.addf %12, %14 : vector<56x64xf32>
    %c0_13 = arith.constant 0 : index
    %c0_14 = arith.constant 0 : index
    %16 = vector.load %arg21[%c0_13, %c0_14] : memref<112x64xf32, #tpu.memory_space<vmem>>, vector<56x64xf32>
    tpu.vector_store %arg21[%c0_13, %c0_14], %15 {strides = array<i32>} : memref<112x64xf32, #tpu.memory_space<vmem>>, vector<56x64xf32>,
    %17 = vector.extract_strided_slice %7 {offsets = [8, 0], sizes = [8, 128], strides = [1, 1]} : vector<16x128xf32> to vector<8x128xf32>
    %18 = vector.extract_strided_slice %17 {offsets = [0, 0], sizes = [8, 64], strides = [1, 1]} : vector<8x128xf32> to vector<8x64xf32>
    %19 = vector.extract_strided_slice %17 {offsets = [0, 64], sizes = [8, 64], strides = [1, 1]} : vector<8x128xf32> to vector<8x64xf32>
    %c0_15 = arith.constant 0 : index
    %c0_16 = arith.constant 0 : index
    %20 = vector.load %arg2[%c0_15, %c0_16] : memref<56x8xf32, #tpu.memory_space<vmem>>, vector<56x8xf32>
    %cst_17 = arith.constant dense<0.000000e+00> : vector<56x64xf32>
    %21 = tpu.matmul %20, %18, %cst_17 {dimension_numbers = #tpu.dot_dimension_numbers<[1], [0], [0], [1], [0, 0, 1, 1], [], []>} : vector<56x8xf32>, vector<8x64xf32>, vector<56x64xf32> -> vector<56x64xf32>
    %c0_18 = arith.constant 0 : index
    %c0_19 = arith.constant 0 : index
    %22 = vector.load %arg3[%c0_18, %c0_19] : memref<56x8xf32, #tpu.memory_space<vmem>>, vector<56x8xf32>
    %cst_20 = arith.constant dense<0.000000e+00> : vector<56x64xf32>
    %23 = tpu.matmul %22, %19, %cst_20 {dimension_numbers = #tpu.dot_dimension_numbers<[1], [0], [0], [1], [0, 0, 1, 1], [], []>} : vector<56x8xf32>, vector<8x64xf32>, vector<56x64xf32> -> vector<56x64xf32>
    %24 = arith.addf %21, %23 : vector<56x64xf32>
    %c56 = arith.constant 56 : index
    %c0_21 = arith.constant 0 : index
    %25 = vector.load %arg21[%c56, %c0_21] : memref<112x64xf32, #tpu.memory_space<vmem>>, vector<56x64xf32>
    tpu.vector_store %arg21[%c56, %c0_21], %24 {strides = array<i32>} : memref<112x64xf32, #tpu.memory_space<vmem>>, vector<56x64xf32>,
    %c0_22 = arith.constant 0 : index
    %c0_23 = arith.constant 0 : index
    %26 = vector.load %arg21[%c0_22, %c0_23] : memref<112x64xf32, #tpu.memory_space<vmem>>, vector<112x64xf32>
    %c0_24 = arith.constant 0 : index
    %c0_25 = arith.constant 0 : index
    %27 = vector.load %arg7[%c0_24, %c0_25] : memref<1x64xf32, #tpu.memory_space<vmem>>, vector<1x64xf32>
    %28 = vector.broadcast %27 : vector<1x64xf32> to vector<112x64xf32>
    %29 = arith.addf %26, %28 : vector<112x64xf32>
    %30 = math.tanh %29 : vector<112x64xf32>
    %c0_26 = arith.constant 0 : index
    %c0_27 = arith.constant 0 : index
    %31 = vector.load %arg8[%c0_26, %c0_27] : memref<64x64xf32, #tpu.memory_space<vmem>>, vector<64x64xf32>
    %cst_28 = arith.constant dense<0.000000e+00> : vector<112x64xf32>
    %32 = tpu.matmul %30, %31, %cst_28 {dimension_numbers = #tpu.dot_dimension_numbers<[1], [0], [0], [1], [0, 0, 1, 1], [], []>} : vector<112x64xf32>, vector<64x64xf32>, vector<112x64xf32> -> vector<112x64xf32>
    %c0_29 = arith.constant 0 : index
    %c0_30 = arith.constant 0 : index
    %33 = vector.load %arg9[%c0_29, %c0_30] : memref<1x64xf32, #tpu.memory_space<vmem>>, vector<1x64xf32>
    %34 = vector.broadcast %33 : vector<1x64xf32> to vector<112x64xf32>
    %35 = arith.addf %32, %34 : vector<112x64xf32>
    %36 = math.tanh %35 : vector<112x64xf32>
    %c0_31 = arith.constant 0 : index
    %c0_32 = arith.constant 0 : index
    %37 = vector.load %arg5[%c0_31, %c0_32] : memref<112x64xf32, #tpu.memory_space<vmem>>, vector<112x64xf32>
    %38 = arith.mulf %36, %37 : vector<112x64xf32>
    %39 = vector.extract_strided_slice %38 {offsets = [0, 0], sizes = [112, 32], strides = [1, 1]} : vector<112x64xf32> to vector<112x32xf32>
    %40 = vector.extract_strided_slice %38 {offsets = [0, 32], sizes = [112, 32], strides = [1, 1]} : vector<112x64xf32> to vector<112x32xf32>
    %41 = arith.addf %39, %40 : vector<112x32xf32>
    %42 = vector.extract_strided_slice %41 {offsets = [0, 0], sizes = [56, 32], strides = [1, 1]} : vector<112x32xf32> to vector<56x32xf32>
    %c0_33 = arith.constant 0 : index
    %c0_34 = arith.constant 0 : index
    %43 = vector.load %arg4[%c0_33, %c0_34] : memref<8x56xf32, #tpu.memory_space<vmem>>, vector<8x56xf32>
    %cst_35 = arith.constant dense<0.000000e+00> : vector<8x32xf32>
    %44 = tpu.matmul %43, %42, %cst_35 {dimension_numbers = #tpu.dot_dimension_numbers<[1], [0], [0], [1], [0, 0, 1, 1], [], []>} : vector<8x56xf32>, vector<56x32xf32>, vector<8x32xf32> -> vector<8x32xf32>
    %c0_36 = arith.constant 0 : index
    %c0_37 = arith.constant 0 : index
    %45 = vector.load %arg22[%c0_36, %c0_37] : memref<16x32xf32, #tpu.memory_space<vmem>>, vector<8x32xf32>
    tpu.vector_store %arg22[%c0_36, %c0_37], %44 {strides = array<i32>} : memref<16x32xf32, #tpu.memory_space<vmem>>, vector<8x32xf32>,
    %46 = vector.extract_strided_slice %41 {offsets = [56, 0], sizes = [56, 32], strides = [1, 1]} : vector<112x32xf32> to vector<56x32xf32>
    %c0_38 = arith.constant 0 : index
    %c0_39 = arith.constant 0 : index
    %47 = vector.load %arg4[%c0_38, %c0_39] : memref<8x56xf32, #tpu.memory_space<vmem>>, vector<8x56xf32>
    %cst_40 = arith.constant dense<0.000000e+00> : vector<8x32xf32>
    %48 = tpu.matmul %47, %46, %cst_40 {dimension_numbers = #tpu.dot_dimension_numbers<[1], [0], [0], [1], [0, 0, 1, 1], [], []>} : vector<8x56xf32>, vector<56x32xf32>, vector<8x32xf32> -> vector<8x32xf32>
    %c8 = arith.constant 8 : index
    %c0_41 = arith.constant 0 : index
    %49 = vector.load %arg22[%c8, %c0_41] : memref<16x32xf32, #tpu.memory_space<vmem>>, vector<8x32xf32>
    tpu.vector_store %arg22[%c8, %c0_41], %48 {strides = array<i32>} : memref<16x32xf32, #tpu.memory_space<vmem>>, vector<8x32xf32>,
    %c0_42 = arith.constant 0 : index
    %c0_43 = arith.constant 0 : index
    %50 = vector.load %arg22[%c0_42, %c0_43] : memref<16x32xf32, #tpu.memory_space<vmem>>, vector<16x32xf32>
    %c0_44 = arith.constant 0 : index
    %c0_45 = arith.constant 0 : index
    %51 = vector.load %arg11[%c0_44, %c0_45] : memref<4x96xf32, #tpu.memory_space<vmem>>, vector<4x96xf32>
    %cst_46 = arith.constant dense<0.000000e+00> : vector<16x96xf32>
    %52 = tpu.matmul %4, %51, %cst_46 {dimension_numbers = #tpu.dot_dimension_numbers<[1], [0], [0], [1], [0, 0, 1, 1], [], []>} : vector<16x4xf32>, vector<4x96xf32>, vector<16x96xf32> -> vector<16x96xf32>
    %c0_47 = arith.constant 0 : index
    %c0_48 = arith.constant 0 : index
    %53 = vector.load %arg12[%c0_47, %c0_48] : memref<1x96xf32, #tpu.memory_space<vmem>>, vector<1x96xf32>
    %54 = vector.broadcast %53 : vector<1x96xf32> to vector<16x96xf32>
    %55 = arith.addf %52, %54 : vector<16x96xf32>
    %c0_49 = arith.constant 0 : index
    %c0_50 = arith.constant 0 : index
    %56 = vector.load %arg10[%c0_49, %c0_50] : memref<32x96xf32, #tpu.memory_space<vmem>>, vector<32x96xf32>
    %cst_51 = arith.constant dense<0.000000e+00> : vector<16x96xf32>
    %57 = tpu.matmul %50, %56, %cst_51 {dimension_numbers = #tpu.dot_dimension_numbers<[1], [0], [0], [1], [0, 0, 1, 1], [], []>} : vector<16x32xf32>, vector<32x96xf32>, vector<16x96xf32> -> vector<16x96xf32>
    %58 = vector.extract_strided_slice %55 {offsets = [0, 0], sizes = [16, 32], strides = [1, 1]} : vector<16x96xf32> to vector<16x32xf32>
    %59 = vector.extract_strided_slice %57 {offsets = [0, 0], sizes = [16, 32], strides = [1, 1]} : vector<16x96xf32> to vector<16x32xf32>
    %60 = arith.addf %58, %59 : vector<16x32xf32>
    %61 = arith.negf %60 : vector<16x32xf32>
    %62 = math.exp %61 : vector<16x32xf32>
    %cst_52 = arith.constant 1.000000e+00 : f32
    %63 = vector.broadcast %cst_52 : f32 to vector<16x32xf32>
    %64 = arith.addf %63, %62 : vector<16x32xf32>
    %65 = arith.divf %63, %64 : vector<16x32xf32>
    %66 = vector.extract_strided_slice %55 {offsets = [0, 32], sizes = [16, 32], strides = [1, 1]} : vector<16x96xf32> to vector<16x32xf32>
    %67 = vector.extract_strided_slice %57 {offsets = [0, 32], sizes = [16, 32], strides = [1, 1]} : vector<16x96xf32> to vector<16x32xf32>
    %68 = arith.addf %66, %67 : vector<16x32xf32>
    %69 = arith.negf %68 : vector<16x32xf32>
    %70 = math.exp %69 : vector<16x32xf32>
    %cst_53 = arith.constant 1.000000e+00 : f32
    %71 = vector.broadcast %cst_53 : f32 to vector<16x32xf32>
    %72 = arith.addf %71, %70 : vector<16x32xf32>
    %73 = arith.divf %71, %72 : vector<16x32xf32>
    %74 = vector.extract_strided_slice %55 {offsets = [0, 64], sizes = [16, 32], strides = [1, 1]} : vector<16x96xf32> to vector<16x32xf32>
    %75 = vector.extract_strided_slice %57 {offsets = [0, 64], sizes = [16, 32], strides = [1, 1]} : vector<16x96xf32> to vector<16x32xf32>
    %76 = arith.mulf %65, %75 : vector<16x32xf32>
    %77 = arith.addf %74, %76 : vector<16x32xf32>
    %78 = math.tanh %77 : vector<16x32xf32>
    %cst_54 = arith.constant 1.000000e+00 : f32
    %79 = vector.broadcast %cst_54 : f32 to vector<16x32xf32>
    %80 = arith.subf %79, %73 : vector<16x32xf32>
    %81 = arith.mulf %80, %78 : vector<16x32xf32>
    %82 = arith.mulf %73, %5 : vector<16x32xf32>
    %83 = arith.addf %81, %82 : vector<16x32xf32>
    %c0_55 = arith.constant 0 : index
    %c0_56 = arith.constant 0 : index
    %84 = vector.load %arg20[%c0_55, %c0_56] : memref<16x32xf32, #tpu.memory_space<vmem>>, vector<16x32xf32>
    tpu.vector_store %arg20[%c0_55, %c0_56], %83 {strides = array<i32>} : memref<16x32xf32, #tpu.memory_space<vmem>>, vector<16x32xf32>,
    %c0_57 = arith.constant 0 : index
    %c0_58 = arith.constant 0 : index
    %85 = vector.load %arg13[%c0_57, %c0_58] : memref<32x32xf32, #tpu.memory_space<vmem>>, vector<32x32xf32>
    %cst_59 = arith.constant dense<0.000000e+00> : vector<16x32xf32>
    %86 = tpu.matmul %83, %85, %cst_59 {dimension_numbers = #tpu.dot_dimension_numbers<[1], [0], [0], [1], [0, 0, 1, 1], [], []>} : vector<16x32xf32>, vector<32x32xf32>, vector<16x32xf32> -> vector<16x32xf32>
    %c0_60 = arith.constant 0 : index
    %c0_61 = arith.constant 0 : index
    %87 = vector.load %arg14[%c0_60, %c0_61] : memref<1x32xf32, #tpu.memory_space<vmem>>, vector<1x32xf32>
    %88 = vector.broadcast %87 : vector<1x32xf32> to vector<16x32xf32>
    %89 = arith.addf %86, %88 : vector<16x32xf32>
    %cst_62 = arith.constant 0.000000e+00 : f32
    %90 = vector.broadcast %cst_62 : f32 to vector<16x32xf32>
    %91 = arith.maximumf %89, %90 : vector<16x32xf32>
    %c0_63 = arith.constant 0 : index
    %c0_64 = arith.constant 0 : index
    %92 = vector.load %arg15[%c0_63, %c0_64] : memref<32x32xf32, #tpu.memory_space<vmem>>, vector<32x32xf32>
    %cst_65 = arith.constant dense<0.000000e+00> : vector<16x32xf32>
    %93 = tpu.matmul %91, %92, %cst_65 {dimension_numbers = #tpu.dot_dimension_numbers<[1], [0], [0], [1], [0, 0, 1, 1], [], []>} : vector<16x32xf32>, vector<32x32xf32>, vector<16x32xf32> -> vector<16x32xf32>
    %c0_66 = arith.constant 0 : index
    %c0_67 = arith.constant 0 : index
    %94 = vector.load %arg16[%c0_66, %c0_67] : memref<1x32xf32, #tpu.memory_space<vmem>>, vector<1x32xf32>
    %95 = vector.broadcast %94 : vector<1x32xf32> to vector<16x32xf32>
    %96 = arith.addf %93, %95 : vector<16x32xf32>
    %cst_68 = arith.constant 0.000000e+00 : f32
    %97 = vector.broadcast %cst_68 : f32 to vector<16x32xf32>
    %98 = arith.maximumf %96, %97 : vector<16x32xf32>
    %c0_69 = arith.constant 0 : index
    %c0_70 = arith.constant 0 : index
    %99 = vector.load %arg17[%c0_69, %c0_70] : memref<32x4xf32, #tpu.memory_space<vmem>>, vector<32x4xf32>
    %cst_71 = arith.constant dense<0.000000e+00> : vector<16x4xf32>
    %100 = tpu.matmul %98, %99, %cst_71 {dimension_numbers = #tpu.dot_dimension_numbers<[1], [0], [0], [1], [0, 0, 1, 1], [], []>} : vector<16x32xf32>, vector<32x4xf32>, vector<16x4xf32> -> vector<16x4xf32>
    %c0_72 = arith.constant 0 : index
    %c0_73 = arith.constant 0 : index
    %101 = vector.load %arg18[%c0_72, %c0_73] : memref<1x4xf32, #tpu.memory_space<vmem>>, vector<1x4xf32>
    %102 = vector.broadcast %101 : vector<1x4xf32> to vector<16x4xf32>
    %103 = arith.addf %100, %102 : vector<16x4xf32>
    %104 = arith.addf %4, %103 : vector<16x4xf32>
    %c0_74 = arith.constant 0 : index
    %c0_75 = arith.constant 0 : index
    %c0_76 = arith.constant 0 : index
    %105 = vector.load %arg19[%c0_74, %c0_75, %c0_76] : memref<1x16x4xf32, #tpu.memory_space<vmem>>, vector<1x16x4xf32>
    %106 = vector.shape_cast %105 : vector<1x16x4xf32> to vector<16x4xf32>
    %107 = vector.shape_cast %104 : vector<16x4xf32> to vector<1x16x4xf32>
    tpu.vector_store %arg19[%c0_74, %c0_75, %c0_76], %107 {strides = array<i32>} : memref<1x16x4xf32, #tpu.memory_space<vmem>>, vector<1x16x4xf32>,
    return
  }
  func.func @transform_0(%arg0: i32) -> (i32, i32, i32) {
    %c0_i32 = arith.constant 0 : i32
    %c0_i32_0 = arith.constant 0 : i32
    %c0_i32_1 = arith.constant 0 : i32
    return %arg0, %c0_i32, %c0_i32_0 : i32, i32, i32
  }
  func.func @transform_1(%arg0: i32) -> (i32, i32) {
    %c0_i32 = arith.constant 0 : i32
    %c0_i32_0 = arith.constant 0 : i32
    %c0_i32_1 = arith.constant 0 : i32
    return %c0_i32, %c0_i32_0 : i32, i32
  }
  func.func @transform_2(%arg0: i32) -> (i32, i32) {
    %c0_i32 = arith.constant 0 : i32
    %c0_i32_0 = arith.constant 0 : i32
    %c0_i32_1 = arith.constant 0 : i32
    return %c0_i32, %c0_i32_0 : i32, i32
  }
  func.func @transform_3(%arg0: i32) -> (i32, i32) {
    %c0_i32 = arith.constant 0 : i32
    %c0_i32_0 = arith.constant 0 : i32
    %c0_i32_1 = arith.constant 0 : i32
    return %c0_i32, %c0_i32_0 : i32, i32
  }
  func.func @transform_4(%arg0: i32) -> (i32, i32) {
    %c0_i32 = arith.constant 0 : i32
    %c0_i32_0 = arith.constant 0 : i32
    %c0_i32_1 = arith.constant 0 : i32
    return %c0_i32, %c0_i32_0 : i32, i32
  }
  func.func @transform_5(%arg0: i32) -> (i32, i32) {
    %c0_i32 = arith.constant 0 : i32
    %c0_i32_0 = arith.constant 0 : i32
    %c0_i32_1 = arith.constant 0 : i32
    return %c0_i32, %c0_i32_0 : i32, i32
  }
  func.func @transform_6(%arg0: i32) -> (i32, i32) {
    %c0_i32 = arith.constant 0 : i32
    %c0_i32_0 = arith.constant 0 : i32
    %c0_i32_1 = arith.constant 0 : i32
    return %c0_i32, %c0_i32_0 : i32, i32
  }
  func.func @transform_7(%arg0: i32) -> (i32, i32) {
    %c0_i32 = arith.constant 0 : i32
    %c0_i32_0 = arith.constant 0 : i32
    %c0_i32_1 = arith.constant 0 : i32
    return %c0_i32, %c0_i32_0 : i32, i32
  }
  func.func @transform_8(%arg0: i32) -> (i32, i32) {
    %c0_i32 = arith.constant 0 : i32
    %c0_i32_0 = arith.constant 0 : i32
    %c0_i32_1 = arith.constant 0 : i32
    return %c0_i32, %c0_i32_0 : i32, i32
  }
  func.func @transform_9(%arg0: i32) -> (i32, i32) {
    %c0_i32 = arith.constant 0 : i32
    %c0_i32_0 = arith.constant 0 : i32
    %c0_i32_1 = arith.constant 0 : i32
    return %c0_i32, %c0_i32_0 : i32, i32
  }
  func.func @transform_10(%arg0: i32) -> (i32, i32) {
    %c0_i32 = arith.constant 0 : i32
    %c0_i32_0 = arith.constant 0 : i32
    %c0_i32_1 = arith.constant 0 : i32
    return %c0_i32, %c0_i32_0 : i32, i32
  }
  func.func @transform_11(%arg0: i32) -> (i32, i32) {
    %c0_i32 = arith.constant 0 : i32
    %c0_i32_0 = arith.constant 0 : i32
    %c0_i32_1 = arith.constant 0 : i32
    return %c0_i32, %c0_i32_0 : i32, i32
  }
  func.func @transform_12(%arg0: i32) -> (i32, i32) {
    %c0_i32 = arith.constant 0 : i32
    %c0_i32_0 = arith.constant 0 : i32
    %c0_i32_1 = arith.constant 0 : i32
    return %c0_i32, %c0_i32_0 : i32, i32
  }
  func.func @transform_13(%arg0: i32) -> (i32, i32) {
    %c0_i32 = arith.constant 0 : i32
    %c0_i32_0 = arith.constant 0 : i32
    %c0_i32_1 = arith.constant 0 : i32
    return %c0_i32, %c0_i32_0 : i32, i32
  }
  func.func @transform_14(%arg0: i32) -> (i32, i32) {
    %c0_i32 = arith.constant 0 : i32
    %c0_i32_0 = arith.constant 0 : i32
    %c0_i32_1 = arith.constant 0 : i32
    return %c0_i32, %c0_i32_0 : i32, i32
  }
  func.func @transform_15(%arg0: i32) -> (i32, i32) {
    %c0_i32 = arith.constant 0 : i32
    %c0_i32_0 = arith.constant 0 : i32
    %c0_i32_1 = arith.constant 0 : i32
    return %c0_i32, %c0_i32_0 : i32, i32
  }
  func.func @transform_16(%arg0: i32) -> (i32, i32) {
    %c0_i32 = arith.constant 0 : i32
    %c0_i32_0 = arith.constant 0 : i32
    %c0_i32_1 = arith.constant 0 : i32
    return %c0_i32, %c0_i32_0 : i32, i32
  }
  func.func @transform_17(%arg0: i32) -> (i32, i32) {
    %c0_i32 = arith.constant 0 : i32
    %c0_i32_0 = arith.constant 0 : i32
    %c0_i32_1 = arith.constant 0 : i32
    return %c0_i32, %c0_i32_0 : i32, i32
  }
  func.func @transform_18(%arg0: i32) -> (i32, i32, i32) {
    %c0_i32 = arith.constant 0 : i32
    %c0_i32_0 = arith.constant 0 : i32
    %c0_i32_1 = arith.constant 0 : i32
    return %arg0, %c0_i32, %c0_i32_0 : i32, i32, i32
  }
}

</mosaic_0001>

<llo_original>
// kernel: tpu_custom_call.1
$region0: #{tpu_custom_call.1}
  #allocation0 [shape = 'u32[]', space=smem, size = 0x4, offset = 0x4, fixed_abs, tag = 'smem constant byte address 0x4 - core index']
  #allocation1 [shape = 'u32[72,128]{1,0:T(1,128)}', space=vmem, size = 0x9000, scoped, tag = 'internal scratch']
  #allocation2 [shape = 'f32[16,32]{1,0:T(8,128)}', space=vmem, size = 0x2000, scoped, tag = 'scratch operand']
  #allocation3 [shape = 'f32[112,64]{1,0:T(8,128)}', space=vmem, size = 0xe000, scoped, tag = 'scratch operand']
  #allocation4 [shape = 'f32[16,32]{1,0:T(8,128)}', space=vmem, size = 0x2000, scoped, tag = 'scratch operand']
  %s0 = inlined_call_operand.vmem [shape: f32[8,16,4], index: 0, kind: input, shape index: {}]
  %s1 = inlined_call_operand.vmem [shape: f32[56,8], index: 1, kind: input, shape index: {}]
  %s2 = inlined_call_operand.vmem [shape: f32[56,8], index: 2, kind: input, shape index: {}]
  %s3 = inlined_call_operand.vmem [shape: f32[8,56], index: 3, kind: input, shape index: {}]
  %s4 = inlined_call_operand.vmem [shape: f32[112,64], index: 4, kind: input, shape index: {}]
  %s5 = inlined_call_operand.vmem [shape: f32[32,128], index: 5, kind: input, shape index: {}]
  %s6 = inlined_call_operand.vmem [shape: f32[1,64], index: 6, kind: input, shape index: {}]
  %s7 = inlined_call_operand.vmem [shape: f32[64,64], index: 7, kind: input, shape index: {}]
  %s8 = inlined_call_operand.vmem [shape: f32[1,64], index: 8, kind: input, shape index: {}]
  %s9 = inlined_call_operand.vmem [shape: f32[32,96], index: 9, kind: input, shape index: {}]
  %s10 = inlined_call_operand.vmem [shape: f32[4,96], index: 10, kind: input, shape index: {}]
  %s11 = inlined_call_operand.vmem [shape: f32[1,96], index: 11, kind: input, shape index: {}]
  %s12 = inlined_call_operand.vmem [shape: f32[32,32], index: 12, kind: input, shape index: {}]
  %s13 = inlined_call_operand.vmem [shape: f32[1,32], index: 13, kind: input, shape index: {}]
  %s14 = inlined_call_operand.vmem [shape: f32[32,32], index: 14, kind: input, shape index: {}]
  %s15 = inlined_call_operand.vmem [shape: f32[1,32], index: 15, kind: input, shape index: {}]
  %s16 = inlined_call_operand.vmem [shape: f32[32,4], index: 16, kind: input, shape index: {}]
  %s17 = inlined_call_operand.vmem [shape: f32[1,4], index: 17, kind: input, shape index: {}]
  %s18 = inlined_call_operand.vmem [shape: f32[7,16,4], index: 18, kind: output, shape index: {}]
  %s19 = sld [smem:[#allocation0]]
  $region109: #{tpu_custom_call.1} parent=0
    _
  %s21 = ssub.s32 1, %s19
  %s22 = scalar_select 0, %s21, %s19
  loop: start=0, step=1, limit=9
  $region2: #{tpu_custom_call.1} parent=0 // loop_pre_header
    _
  $region3: #{tpu_custom_call.1} parent=0 // loop_header
    %s24 = sphi 0, %s28
    %p25 = scmp.ge.s32.totalorder %s24, 9
    %s34 = sphi 0, %s36
    %s37 = sphi 0, %s34
    %s38 = sphi 0, %s37
    %s54 = sphi 0, %s38
    %s58 = sphi 0, %s58
    %s60 = sphi 0, %s58
    %s61 = sphi 0, %s60
    %s75 = sphi 0, %s61
    %s79 = sphi 0, %s79
    %s81 = sphi 0, %s79
    %s82 = sphi 0, %s81
    %s96 = sphi 0, %s82
    %s100 = sphi 0, %s100
    %s102 = sphi 0, %s100
    %s103 = sphi 0, %s102
    %s117 = sphi 0, %s103
    %s121 = sphi 0, %s121
    %s123 = sphi 0, %s121
    %s124 = sphi 0, %s123
    %s138 = sphi 0, %s124
    %s142 = sphi 0, %s142
    %s144 = sphi 0, %s142
    %s145 = sphi 0, %s144
    %s159 = sphi 0, %s145
    %s163 = sphi 0, %s163
    %s165 = sphi 0, %s163
    %s166 = sphi 0, %s165
    %s180 = sphi 0, %s166
    %s184 = sphi 0, %s184
    %s186 = sphi 0, %s184
    %s187 = sphi 0, %s186
    %s201 = sphi 0, %s187
    %s205 = sphi 0, %s205
    %s207 = sphi 0, %s205
    %s208 = sphi 0, %s207
    %s222 = sphi 0, %s208
    %s226 = sphi 0, %s226
    %s228 = sphi 0, %s226
    %s229 = sphi 0, %s228
    %s243 = sphi 0, %s229
    %s247 = sphi 0, %s247
    %s249 = sphi 0, %s247
    %s250 = sphi 0, %s249
    %s264 = sphi 0, %s250
    %s268 = sphi 0, %s268
    %s270 = sphi 0, %s268
    %s271 = sphi 0, %s270
    %s285 = sphi 0, %s271
    %s289 = sphi 0, %s289
    %s291 = sphi 0, %s289
    %s292 = sphi 0, %s291
    %s306 = sphi 0, %s292
    %s310 = sphi 0, %s310
    %s312 = sphi 0, %s310
    %s313 = sphi 0, %s312
    %s327 = sphi 0, %s313
    %s331 = sphi 0, %s331
    %s333 = sphi 0, %s331
    %s334 = sphi 0, %s333
    %s348 = sphi 0, %s334
    %s352 = sphi 0, %s352
    %s354 = sphi 0, %s352
    %s355 = sphi 0, %s354
    %s369 = sphi 0, %s355
    %s373 = sphi 0, %s373
    %s375 = sphi 0, %s373
    %s376 = sphi 0, %s375
    %s390 = sphi 0, %s376
    %s394 = sphi 0, %s394
    %s396 = sphi 0, %s394
    %s397 = sphi 0, %s396
    %s411 = sphi 0, %s397
    %s417 = sphi 0, %s419
    %s420 = sphi 0, %s417
    %s421 = sphi 0, %s420
    %s437 = sphi 0, %s421
  $region4: #{tpu_custom_call.1} parent=0 // loop_header_branch
    %27 = sbr.rel (%p25) target = $region8
  $region5: #{tpu_custom_call.1} parent=0 // loop_body
    %s29 = ssub.s32 %s24, 1
    %s30 = ssub.s32 %s24, 2
    %s31 = sadd.s32 %s24, 1
    %s32 = ssub.s32 %s24, %s31
    %p33 = scmp.eq.s32.totalorder %s32, 0
    %s35 = sadd.s32 %s34, 1
    %s36 = scalar_select %p33, %s34, %s35
    %p39 = pneg %p33
    %p40 = scmp.eq.s32.totalorder %s24, 6
    %p41 = por %p39, %p40
    %p42 = scmp.ne.s32.totalorder %s34, %s37
    %p43 = scmp.eq.s32.totalorder %s24, 0
    %p44 = por %p42, %p43
    %p45 = scmp.ne.s32.totalorder %s34, %s37
    %p46 = scmp.eq.s32.totalorder %s29, 6
    %p47 = por %p45, %p46
    %p48 = scmp.ne.s32.totalorder %s37, %s38
    %p49 = scmp.eq.s32.totalorder %s29, 0
    %p50 = por %p48, %p49
    %p51 = scmp.ne.s32.totalorder %s37, %s38
    %p52 = scmp.eq.s32.totalorder %s30, 6
    %p53 = por %p51, %p52
    %p55 = scmp.ne.s32.totalorder %s38, %s54
    %p56 = scmp.eq.s32.totalorder %s30, 0
    %p57 = por %p55, %p56
    %s59 = sadd.s32 %s58, 1
    %p62 = scmp.eq.s32.totalorder %s24, 6
    %p63 = scmp.ne.s32.totalorder %s58, %s60
    %p64 = scmp.eq.s32.totalorder %s24, 0
    %p65 = por %p63, %p64
    %p66 = scmp.ne.s32.totalorder %s58, %s60
    %p67 = scmp.eq.s32.totalorder %s29, 6
    %p68 = por %p66, %p67
    %p69 = scmp.ne.s32.totalorder %s60, %s61
    %p70 = scmp.eq.s32.totalorder %s29, 0
    %p71 = por %p69, %p70
    %p72 = scmp.ne.s32.totalorder %s60, %s61
    %p73 = scmp.eq.s32.totalorder %s30, 6
    %p74 = por %p72, %p73
    %p76 = scmp.ne.s32.totalorder %s61, %s75
    %p77 = scmp.eq.s32.totalorder %s30, 0
    %p78 = por %p76, %p77
    %s80 = sadd.s32 %s79, 1
    %p83 = scmp.eq.s32.totalorder %s24, 6
    %p84 = scmp.ne.s32.totalorder %s79, %s81
    %p85 = scmp.eq.s32.totalorder %s24, 0
    %p86 = por %p84, %p85
    %p87 = scmp.ne.s32.totalorder %s79, %s81
    %p88 = scmp.eq.s32.totalorder %s29, 6
    %p89 = por %p87, %p88
    %p90 = scmp.ne.s32.totalorder %s81, %s82
    %p91 = scmp.eq.s32.totalorder %s29, 0
    %p92 = por %p90, %p91
    %p93 = scmp.ne.s32.totalorder %s81, %s82
    %p94 = scmp.eq.s32.totalorder %s30, 6
    %p95 = por %p93, %p94
    %p97 = scmp.ne.s32.totalorder %s82, %s96
    %p98 = scmp.eq.s32.totalorder %s30, 0
    %p99 = por %p97, %p98
    %s101 = sadd.s32 %s100, 1
    %p104 = scmp.eq.s32.totalorder %s24, 6
    %p105 = scmp.ne.s32.totalorder %s100, %s102
    %p106 = scmp.eq.s32.totalorder %s24, 0
    %p107 = por %p105, %p106
    %p108 = scmp.ne.s32.totalorder %s100, %s102
    %p109 = scmp.eq.s32.totalorder %s29, 6
    %p110 = por %p108, %p109
    %p111 = scmp.ne.s32.totalorder %s102, %s103
    %p112 = scmp.eq.s32.totalorder %s29, 0
    %p113 = por %p111, %p112
    %p114 = scmp.ne.s32.totalorder %s102, %s103
    %p115 = scmp.eq.s32.totalorder %s30, 6
    %p116 = por %p114, %p115
    %p118 = scmp.ne.s32.totalorder %s103, %s117
    %p119 = scmp.eq.s32.totalorder %s30, 0
    %p120 = por %p118, %p119
    %s122 = sadd.s32 %s121, 1
    %p125 = scmp.eq.s32.totalorder %s24, 6
    %p126 = scmp.ne.s32.totalorder %s121, %s123
    %p127 = scmp.eq.s32.totalorder %s24, 0
    %p128 = por %p126, %p127
    %p129 = scmp.ne.s32.totalorder %s121, %s123
    %p130 = scmp.eq.s32.totalorder %s29, 6
    %p131 = por %p129, %p130
    %p132 = scmp.ne.s32.totalorder %s123, %s124
    %p133 = scmp.eq.s32.totalorder %s29, 0
    %p134 = por %p132, %p133
    %p135 = scmp.ne.s32.totalorder %s123, %s124
    %p136 = scmp.eq.s32.totalorder %s30, 6
    %p137 = por %p135, %p136
    %p139 = scmp.ne.s32.totalorder %s124, %s138
    %p140 = scmp.eq.s32.totalorder %s30, 0
    %p141 = por %p139, %p140
    %s143 = sadd.s32 %s142, 1
    %p146 = scmp.eq.s32.totalorder %s24, 6
    %p147 = scmp.ne.s32.totalorder %s142, %s144
    %p148 = scmp.eq.s32.totalorder %s24, 0
    %p149 = por %p147, %p148
    %p150 = scmp.ne.s32.totalorder %s142, %s144
    %p151 = scmp.eq.s32.totalorder %s29, 6
    %p152 = por %p150, %p151
    %p153 = scmp.ne.s32.totalorder %s144, %s145
    %p154 = scmp.eq.s32.totalorder %s29, 0
    %p155 = por %p153, %p154
    %p156 = scmp.ne.s32.totalorder %s144, %s145
    %p157 = scmp.eq.s32.totalorder %s30, 6
    %p158 = por %p156, %p157
    %p160 = scmp.ne.s32.totalorder %s145, %s159
    %p161 = scmp.eq.s32.totalorder %s30, 0
    %p162 = por %p160, %p161
    %s164 = sadd.s32 %s163, 1
    %p167 = scmp.eq.s32.totalorder %s24, 6
    %p168 = scmp.ne.s32.totalorder %s163, %s165
    %p169 = scmp.eq.s32.totalorder %s24, 0
    %p170 = por %p168, %p169
    %p171 = scmp.ne.s32.totalorder %s163, %s165
    %p172 = scmp.eq.s32.totalorder %s29, 6
    %p173 = por %p171, %p172
    %p174 = scmp.ne.s32.totalorder %s165, %s166
    %p175 = scmp.eq.s32.totalorder %s29, 0
    %p176 = por %p174, %p175
    %p177 = scmp.ne.s32.totalorder %s165, %s166
    %p178 = scmp.eq.s32.totalorder %s30, 6
    %p179 = por %p177, %p178
    %p181 = scmp.ne.s32.totalorder %s166, %s180
    %p182 = scmp.eq.s32.totalorder %s30, 0
    %p183 = por %p181, %p182
    %s185 = sadd.s32 %s184, 1
    %p188 = scmp.eq.s32.totalorder %s24, 6
    %p189 = scmp.ne.s32.totalorder %s184, %s186
    %p190 = scmp.eq.s32.totalorder %s24, 0
    %p191 = por %p189, %p190
    %p192 = scmp.ne.s32.totalorder %s184, %s186
    %p193 = scmp.eq.s32.totalorder %s29, 6
    %p194 = por %p192, %p193
    %p195 = scmp.ne.s32.totalorder %s186, %s187
    %p196 = scmp.eq.s32.totalorder %s29, 0
    %p197 = por %p195, %p196
    %p198 = scmp.ne.s32.totalorder %s186, %s187
    %p199 = scmp.eq.s32.totalorder %s30, 6
    %p200 = por %p198, %p199
    %p202 = scmp.ne.s32.totalorder %s187, %s201
    %p203 = scmp.eq.s32.totalorder %s30, 0
    %p204 = por %p202, %p203
    %s206 = sadd.s32 %s205, 1
    %p209 = scmp.eq.s32.totalorder %s24, 6
    %p210 = scmp.ne.s32.totalorder %s205, %s207
    %p211 = scmp.eq.s32.totalorder %s24, 0
    %p212 = por %p210, %p211
    %p213 = scmp.ne.s32.totalorder %s205, %s207
    %p214 = scmp.eq.s32.totalorder %s29, 6
    %p215 = por %p213, %p214
    %p216 = scmp.ne.s32.totalorder %s207, %s208
    %p217 = scmp.eq.s32.totalorder %s29, 0
    %p218 = por %p216, %p217
    %p219 = scmp.ne.s32.totalorder %s207, %s208
    %p220 = scmp.eq.s32.totalorder %s30, 6
    %p221 = por %p219, %p220
    %p223 = scmp.ne.s32.totalorder %s208, %s222
    %p224 = scmp.eq.s32.totalorder %s30, 0
    %p225 = por %p223, %p224
    %s227 = sadd.s32 %s226, 1
    %p230 = scmp.eq.s32.totalorder %s24, 6
    %p231 = scmp.ne.s32.totalorder %s226, %s228
    %p232 = scmp.eq.s32.totalorder %s24, 0
    %p233 = por %p231, %p232
    %p234 = scmp.ne.s32.totalorder %s226, %s228
    %p235 = scmp.eq.s32.totalorder %s29, 6
    %p236 = por %p234, %p235
    %p237 = scmp.ne.s32.totalorder %s228, %s229
    %p238 = scmp.eq.s32.totalorder %s29, 0
    %p239 = por %p237, %p238
    %p240 = scmp.ne.s32.totalorder %s228, %s229
    %p241 = scmp.eq.s32.totalorder %s30, 6
    %p242 = por %p240, %p241
    %p244 = scmp.ne.s32.totalorder %s229, %s243
    %p245 = scmp.eq.s32.totalorder %s30, 0
    %p246 = por %p244, %p245
    %s248 = sadd.s32 %s247, 1
    %p251 = scmp.eq.s32.totalorder %s24, 6
    %p252 = scmp.ne.s32.totalorder %s247, %s249
    %p253 = scmp.eq.s32.totalorder %s24, 0
    %p254 = por %p252, %p253
    %p255 = scmp.ne.s32.totalorder %s247, %s249
    %p256 = scmp.eq.s32.totalorder %s29, 6
    %p257 = por %p255, %p256
    %p258 = scmp.ne.s32.totalorder %s249, %s250
    %p259 = scmp.eq.s32.totalorder %s29, 0
    %p260 = por %p258, %p259
    %p261 = scmp.ne.s32.totalorder %s249, %s250
    %p262 = scmp.eq.s32.totalorder %s30, 6
    %p263 = por %p261, %p262
    %p265 = scmp.ne.s32.totalorder %s250, %s264
    %p266 = scmp.eq.s32.totalorder %s30, 0
    %p267 = por %p265, %p266
    %s269 = sadd.s32 %s268, 1
    %p272 = scmp.eq.s32.totalorder %s24, 6
    %p273 = scmp.ne.s32.totalorder %s268, %s270
    %p274 = scmp.eq.s32.totalorder %s24, 0
    %p275 = por %p273, %p274
    %p276 = scmp.ne.s32.totalorder %s268, %s270
    %p277 = scmp.eq.s32.totalorder %s29, 6
    %p278 = por %p276, %p277
    %p279 = scmp.ne.s32.totalorder %s270, %s271
    %p280 = scmp.eq.s32.totalorder %s29, 0
    %p281 = por %p279, %p280
    %p282 = scmp.ne.s32.totalorder %s270, %s271
    %p283 = scmp.eq.s32.totalorder %s30, 6
    %p284 = por %p282, %p283
    %p286 = scmp.ne.s32.totalorder %s271, %s285
    %p287 = scmp.eq.s32.totalorder %s30, 0
    %p288 = por %p286, %p287
    %s290 = sadd.s32 %s289, 1
    %p293 = scmp.eq.s32.totalorder %s24, 6
    %p294 = scmp.ne.s32.totalorder %s289, %s291
    %p295 = scmp.eq.s32.totalorder %s24, 0
    %p296 = por %p294, %p295
    %p297 = scmp.ne.s32.totalorder %s289, %s291
    %p298 = scmp.eq.s32.totalorder %s29, 6
    %p299 = por %p297, %p298
    %p300 = scmp.ne.s32.totalorder %s291, %s292
    %p301 = scmp.eq.s32.totalorder %s29, 0
    %p302 = por %p300, %p301
    %p303 = scmp.ne.s32.totalorder %s291, %s292
    %p304 = scmp.eq.s32.totalorder %s30, 6
    %p305 = por %p303, %p304
    %p307 = scmp.ne.s32.totalorder %s292, %s306
    %p308 = scmp.eq.s32.totalorder %s30, 0
    %p309 = por %p307, %p308
    %s311 = sadd.s32 %s310, 1
    %p314 = scmp.eq.s32.totalorder %s24, 6
    %p315 = scmp.ne.s32.totalorder %s310, %s312
    %p316 = scmp.eq.s32.totalorder %s24, 0
    %p317 = por %p315, %p316
    %p318 = scmp.ne.s32.totalorder %s310, %s312
    %p319 = scmp.eq.s32.totalorder %s29, 6
    %p320 = por %p318, %p319
    %p321 = scmp.ne.s32.totalorder %s312, %s313
    %p322 = scmp.eq.s32.totalorder %s29, 0
    %p323 = por %p321, %p322
    %p324 = scmp.ne.s32.totalorder %s312, %s313
    %p325 = scmp.eq.s32.totalorder %s30, 6
    %p326 = por %p324, %p325
    %p328 = scmp.ne.s32.totalorder %s313, %s327
    %p329 = scmp.eq.s32.totalorder %s30, 0
    %p330 = por %p328, %p329
    %s332 = sadd.s32 %s331, 1
    %p335 = scmp.eq.s32.totalorder %s24, 6
    %p336 = scmp.ne.s32.totalorder %s331, %s333
    %p337 = scmp.eq.s32.totalorder %s24, 0
    %p338 = por %p336, %p337
    %p339 = scmp.ne.s32.totalorder %s331, %s333
    %p340 = scmp.eq.s32.totalorder %s29, 6
    %p341 = por %p339, %p340
    %p342 = scmp.ne.s32.totalorder %s333, %s334
    %p343 = scmp.eq.s32.totalorder %s29, 0
    %p344 = por %p342, %p343
    %p345 = scmp.ne.s32.totalorder %s333, %s334
    %p346 = scmp.eq.s32.totalorder %s30, 6
    %p347 = por %p345, %p346
    %p349 = scmp.ne.s32.totalorder %s334, %s348
    %p350 = scmp.eq.s32.totalorder %s30, 0
    %p351 = por %p349, %p350
    %s353 = sadd.s32 %s352, 1
    %p356 = scmp.eq.s32.totalorder %s24, 6
    %p357 = scmp.ne.s32.totalorder %s352, %s354
    %p358 = scmp.eq.s32.totalorder %s24, 0
    %p359 = por %p357, %p358
    %p360 = scmp.ne.s32.totalorder %s352, %s354
    %p361 = scmp.eq.s32.totalorder %s29, 6
    %p362 = por %p360, %p361
    %p363 = scmp.ne.s32.totalorder %s354, %s355
    %p364 = scmp.eq.s32.totalorder %s29, 0
    %p365 = por %p363, %p364
    %p366 = scmp.ne.s32.totalorder %s354, %s355
    %p367 = scmp.eq.s32.totalorder %s30, 6
    %p368 = por %p366, %p367
    %p370 = scmp.ne.s32.totalorder %s355, %s369
    %p371 = scmp.eq.s32.totalorder %s30, 0
    %p372 = por %p370, %p371
    %s374 = sadd.s32 %s373, 1
    %p377 = scmp.eq.s32.totalorder %s24, 6
    %p378 = scmp.ne.s32.totalorder %s373, %s375
    %p379 = scmp.eq.s32.totalorder %s24, 0
    %p380 = por %p378, %p379
    %p381 = scmp.ne.s32.totalorder %s373, %s375
    %p382 = scmp.eq.s32.totalorder %s29, 6
    %p383 = por %p381, %p382
    %p384 = scmp.ne.s32.totalorder %s375, %s376
    %p385 = scmp.eq.s32.totalorder %s29, 0
    %p386 = por %p384, %p385
    %p387 = scmp.ne.s32.totalorder %s375, %s376
    %p388 = scmp.eq.s32.totalorder %s30, 6
    %p389 = por %p387, %p388
    %p391 = scmp.ne.s32.totalorder %s376, %s390
    %p392 = scmp.eq.s32.totalorder %s30, 0
    %p393 = por %p391, %p392
    %s395 = sadd.s32 %s394, 1
    %p398 = scmp.eq.s32.totalorder %s24, 6
    %p399 = scmp.ne.s32.totalorder %s394, %s396
    %p400 = scmp.eq.s32.totalorder %s24, 0
    %p401 = por %p399, %p400
    %p402 = scmp.ne.s32.totalorder %s394, %s396
    %p403 = scmp.eq.s32.totalorder %s29, 6
    %p404 = por %p402, %p403
    %p405 = scmp.ne.s32.totalorder %s396, %s397
    %p406 = scmp.eq.s32.totalorder %s29, 0
    %p407 = por %p405, %p406
    %p408 = scmp.ne.s32.totalorder %s396, %s397
    %p409 = scmp.eq.s32.totalorder %s30, 6
    %p410 = por %p408, %p409
    %p412 = scmp.ne.s32.totalorder %s397, %s411
    %p413 = scmp.eq.s32.totalorder %s30, 0
    %p414 = por %p412, %p413
    %s415 = ssub.s32 %s24, %s31
    %p416 = scmp.eq.s32.totalorder %s415, 0
    %s418 = sadd.s32 %s417, 1
    %s419 = scalar_select %p416, %s417, %s418
    %p422 = pneg %p416
    %p423 = scmp.eq.s32.totalorder %s24, 6
    %p424 = por %p422, %p423
    %p425 = scmp.ne.s32.totalorder %s417, %s420
    %p426 = scmp.eq.s32.totalorder %s24, 0
    %p427 = por %p425, %p426
    %p428 = scmp.ne.s32.totalorder %s417, %s420
    %p429 = scmp.eq.s32.totalorder %s29, 6
    %p430 = por %p428, %p429
    %p431 = scmp.ne.s32.totalorder %s420, %s421
    %p432 = scmp.eq.s32.totalorder %s29, 0
    %p433 = por %p431, %p432
    %p434 = scmp.ne.s32.totalorder %s420, %s421
    %p435 = scmp.eq.s32.totalorder %s30, 6
    %p436 = por %p434, %p435
    %p438 = scmp.ne.s32.totalorder %s421, %s437
    %p439 = scmp.eq.s32.totalorder %s30, 0
    %p440 = por %p438, %p439
    %p441 = scmp.le.s32.totalorder 1, %s24
    %p442 = scmp.lt.s32.totalorder %s24, 8
    %p443 = pnand %p441, %p442
    %p444 = pneg %p443
    // Predicated region
    $region9: #{tpu_custom_call.1} parent=5 // pred_check
      _
    $region10: #{tpu_custom_call.1} parent=5 // pred_check_branch
      %446 = sbr.rel (%p443) target = $region12
    $region11: #{tpu_custom_call.1} parent=5 // pred_region
      %s447 = ssub.s32 %s24, 1
      // Predicated region
      $region13: #{tpu_custom_call.1} parent=11 // pred_check
        %p448 = pneg %p71
      $region14: #{tpu_custom_call.1} parent=11 // pred_check_branch
        %450 = sbr.rel (%p448) target = $region16
      $region15: #{tpu_custom_call.1} parent=11 // pred_region
        _
      $region16: #{tpu_custom_call.1} parent=11 // pred_fallthru
        _
      // Predicated region
      $region17: #{tpu_custom_call.1} parent=11 // pred_check
        %p451 = pneg %p92
      $region18: #{tpu_custom_call.1} parent=11 // pred_check_branch
        %453 = sbr.rel (%p451) target = $region20
      $region19: #{tpu_custom_call.1} parent=11 // pred_region
        _
      $region20: #{tpu_custom_call.1} parent=11 // pred_fallthru
        _
      // Predicated region
      $region21: #{tpu_custom_call.1} parent=11 // pred_check
        %p454 = pneg %p113
      $region22: #{tpu_custom_call.1} parent=11 // pred_check_branch
        %456 = sbr.rel (%p454) target = $region24
      $region23: #{tpu_custom_call.1} parent=11 // pred_region
        _
      $region24: #{tpu_custom_call.1} parent=11 // pred_fallthru
        _
      // Predicated region
      $region25: #{tpu_custom_call.1} parent=11 // pred_check
        %p457 = pneg %p134
      $region26: #{tpu_custom_call.1} parent=11 // pred_check_branch
        %459 = sbr.rel (%p457) target = $region28
      $region27: #{tpu_custom_call.1} parent=11 // pred_region
        _
      $region28: #{tpu_custom_call.1} parent=11 // pred_fallthru
        _
      // Predicated region
      $region29: #{tpu_custom_call.1} parent=11 // pred_check
        %p460 = pneg %p155
      $region30: #{tpu_custom_call.1} parent=11 // pred_check_branch
        %462 = sbr.rel (%p460) target = $region32
      $region31: #{tpu_custom_call.1} parent=11 // pred_region
        _
      $region32: #{tpu_custom_call.1} parent=11 // pred_fallthru
        _
      // Predicated region
      $region33: #{tpu_custom_call.1} parent=11 // pred_check
        %p463 = pneg %p176
      $region34: #{tpu_custom_call.1} parent=11 // pred_check_branch
        %465 = sbr.rel (%p463) target = $region36
      $region35: #{tpu_custom_call.1} parent=11 // pred_region
        _
      $region36: #{tpu_custom_call.1} parent=11 // pred_fallthru
        _
      // Predicated region
      $region37: #{tpu_custom_call.1} parent=11 // pred_check
        %p466 = pneg %p197
      $region38: #{tpu_custom_call.1} parent=11 // pred_check_branch
        %468 = sbr.rel (%p466) target = $region40
      $region39: #{tpu_custom_call.1} parent=11 // pred_region
        _
      $region40: #{tpu_custom_call.1} parent=11 // pred_fallthru
        _
      // Predicated region
      $region41: #{tpu_custom_call.1} parent=11 // pred_check
        %p469 = pneg %p218
      $region42: #{tpu_custom_call.1} parent=11 // pred_check_branch
        %471 = sbr.rel (%p469) target = $region44
      $region43: #{tpu_custom_call.1} parent=11 // pred_region
        _
      $region44: #{tpu_custom_call.1} parent=11 // pred_fallthru
        _
      // Predicated region
      $region45: #{tpu_custom_call.1} parent=11 // pred_check
        %p472 = pneg %p239
      $region46: #{tpu_custom_call.1} parent=11 // pred_check_branch
        %474 = sbr.rel (%p472) target = $region48
      $region47: #{tpu_custom_call.1} parent=11 // pred_region
        _
      $region48: #{tpu_custom_call.1} parent=11 // pred_fallthru
        _
      // Predicated region
      $region49: #{tpu_custom_call.1} parent=11 // pred_check
        %p475 = pneg %p260
      $region50: #{tpu_custom_call.1} parent=11 // pred_check_branch
        %477 = sbr.rel (%p475) target = $region52
      $region51: #{tpu_custom_call.1} parent=11 // pred_region
        _
      $region52: #{tpu_custom_call.1} parent=11 // pred_fallthru
        _
      // Predicated region
      $region53: #{tpu_custom_call.1} parent=11 // pred_check
        %p478 = pneg %p281
      $region54: #{tpu_custom_call.1} parent=11 // pred_check_branch
        %480 = sbr.rel (%p478) target = $region56
      $region55: #{tpu_custom_call.1} parent=11 // pred_region
        _
      $region56: #{tpu_custom_call.1} parent=11 // pred_fallthru
        _
      // Predicated region
      $region57: #{tpu_custom_call.1} parent=11 // pred_check
        %p481 = pneg %p302
      $region58: #{tpu_custom_call.1} parent=11 // pred_check_branch
        %483 = sbr.rel (%p481) target = $region60
      $region59: #{tpu_custom_call.1} parent=11 // pred_region
        _
      $region60: #{tpu_custom_call.1} parent=11 // pred_fallthru
        _
      // Predicated region
      $region61: #{tpu_custom_call.1} parent=11 // pred_check
        %p484 = pneg %p323
      $region62: #{tpu_custom_call.1} parent=11 // pred_check_branch
        %486 = sbr.rel (%p484) target = $region64
      $region63: #{tpu_custom_call.1} parent=11 // pred_region
        _
      $region64: #{tpu_custom_call.1} parent=11 // pred_fallthru
        _
      // Predicated region
      $region65: #{tpu_custom_call.1} parent=11 // pred_check
        %p487 = pneg %p344
      $region66: #{tpu_custom_call.1} parent=11 // pred_check_branch
        %489 = sbr.rel (%p487) target = $region68
      $region67: #{tpu_custom_call.1} parent=11 // pred_region
        _
      $region68: #{tpu_custom_call.1} parent=11 // pred_fallthru
        _
      // Predicated region
      $region69: #{tpu_custom_call.1} parent=11 // pred_check
        %p490 = pneg %p365
      $region70: #{tpu_custom_call.1} parent=11 // pred_check_branch
        %492 = sbr.rel (%p490) target = $region72
      $region71: #{tpu_custom_call.1} parent=11 // pred_region
        _
      $region72: #{tpu_custom_call.1} parent=11 // pred_fallthru
        _
      // Predicated region
      $region73: #{tpu_custom_call.1} parent=11 // pred_check
        %p493 = pneg %p386
      $region74: #{tpu_custom_call.1} parent=11 // pred_check_branch
        %495 = sbr.rel (%p493) target = $region76
      $region75: #{tpu_custom_call.1} parent=11 // pred_region
        _
      $region76: #{tpu_custom_call.1} parent=11 // pred_fallthru
        _
      // Predicated region
      $region77: #{tpu_custom_call.1} parent=11 // pred_check
        %p496 = pneg %p407
      $region78: #{tpu_custom_call.1} parent=11 // pred_check_branch
        %498 = sbr.rel (%p496) target = $region80
      $region79: #{tpu_custom_call.1} parent=11 // pred_region
        _
      $region80: #{tpu_custom_call.1} parent=11 // pred_fallthru
        _
    $region12: #{tpu_custom_call.1} parent=5 // pred_fallthru
      _
    %p499 = scmp.lt.s32.totalorder %s24, 7
    // Predicated region
    $region81: #{tpu_custom_call.1} parent=5 // pred_check
      %p500 = pneg %p499
    $region82: #{tpu_custom_call.1} parent=5 // pred_check_branch
      %502 = sbr.rel (%p500) target = $region84
    $region83: #{tpu_custom_call.1} parent=5 // pred_region
      // Predicated region
      $region85: #{tpu_custom_call.1} parent=83 // pred_check
        %p503 = pneg %p44
      $region86: #{tpu_custom_call.1} parent=83 // pred_check_branch
        %505 = sbr.rel (%p503) target = $region88
      $region87: #{tpu_custom_call.1} parent=83 // pred_region
        %p506 = scmp.lt.s32.totalorder %s24, 7
        %s507 = scalar_select %p506, %s24, 7
        %s508 = smul.addr %s507, 2
        %s509 = smul.addr %s508, 8
        %s510 = scalar_lea.vmem %s0, %s509
      $region88: #{tpu_custom_call.1} parent=83 // pred_fallthru
        _
    $region84: #{tpu_custom_call.1} parent=5 // pred_fallthru
      _
    %p511 = scmp.le.s32.totalorder 1, %s24
    %p512 = scmp.lt.s32.totalorder %s24, 8
    %p513 = pnand %p511, %p512
    %p514 = pneg %p513
    // Predicated region
    $region89: #{tpu_custom_call.1} parent=5 // pred_check
      _
    $region90: #{tpu_custom_call.1} parent=5 // pred_check_branch
      %516 = sbr.rel (%p513) target = $region92
    $region91: #{tpu_custom_call.1} parent=5 // pred_region
      %s517 = ssub.s32 %s24, 1
      %p518 = scmp.lt.s32.totalorder %s29, 7
      %s519 = scalar_select %p518, %s29, 7
      %s520 = smul.addr %s519, 2
      %s521 = smul.addr %s520, 8
      %s522 = scalar_lea.vmem %s0, %s521
      %p523 = pneg %p50
      %p524 = pneg %p47
      %p525 = pneg %p71
      %p526 = pneg %p68
      %p527 = pneg %p92
      %p528 = pneg %p89
      %p529 = pneg %p113
      %p530 = pneg %p110
      %p531 = pneg %p134
      %p532 = pneg %p131
      %p533 = pneg %p155
      %p534 = pneg %p152
      %p535 = pneg %p176
      %p536 = pneg %p173
      %p537 = pneg %p197
      %p538 = pneg %p194
      %p539 = pneg %p218
      %p540 = pneg %p215
      %p541 = pneg %p239
      %p542 = pneg %p236
      %p543 = pneg %p260
      %p544 = pneg %p257
      %p545 = pneg %p281
      %p546 = pneg %p278
      %p547 = pneg %p302
      %p548 = pneg %p299
      %p549 = pneg %p323
      %p550 = pneg %p320
      %p551 = pneg %p344
      %p552 = pneg %p341
      %p553 = pneg %p365
      %p554 = pneg %p362
      %p555 = pneg %p386
      %p556 = pneg %p383
      %p557 = pneg %p407
      %p558 = pneg %p404
      %p559 = pneg %p433
      %p560 = pneg %p430
      %p561 = scmp.lt.s32.totalorder %s29, 6
      %s562 = scalar_select %p561, %s29, 6
      %s563 = smul.addr %s562, 2
      %s564 = smul.addr %s563, 8
      %s565 = scalar_lea.vmem %s18, %s564
      %p566 = scmp.lt.s32.totalorder %s29, 7
      %s567 = scalar_select %p566, %s29, 7
      %s568 = smul.addr %s567, 2
      %s569 = smul.addr %s568, 8
      %s570 = scalar_lea.vmem %s0, %s569
      %p571 = scmp.lt.s32.totalorder %s29, 6
      %s572 = scalar_select %p571, %s29, 6
      %s573 = smul.addr %s572, 2
      %s574 = smul.addr %s573, 8
      %s575 = scalar_lea.vmem %s18, %s574
      %p576 = scmp.eq.s32.totalorder %s29, 0
      // Predicated region
      $region93: #{tpu_custom_call.1} parent=91 // pred_check
        %p577 = pneg %p576
      $region94: #{tpu_custom_call.1} parent=91 // pred_check_branch
        %579 = sbr.rel (%p577) target = $region96
      $region95: #{tpu_custom_call.1} parent=91 // pred_region
        %vm580 = vcmask 261120
        %581 = vst.msk [vmem:[#allocation2] sm:$0xff] %vm580, 0.0
        %582 = vst.msk [vmem:[#allocation2 + $0x8] sm:$0xff] %vm580, 0.0
      $region96: #{tpu_custom_call.1} parent=91 // pred_fallthru
        _
      %v583 = vld [vmem:[%s570] sm:$0xff]
      %v584 = vld [vmem:[%s570 + $0x8] sm:$0xff]
      %v585 = vld [vmem:[#allocation2] sm:$0xff]
      %v586 = vld [vmem:[#allocation2 + $0x8] sm:$0xff]
      %v587 = vld [vmem:[%s5] sm:$0xff]
      %v588 = vld [vmem:[%s5 + $0x8] sm:$0xff]
      %v589 = vld [vmem:[%s5 + $0x10] sm:$0xff]
      %v590 = vld [vmem:[%s5 + $0x18] sm:$0xff]
      %vm591 = vcmask 261120
      %v593 = vsel %vm591, %v585, 0
      %v596 = vsel %vm591, %v586, 0
      %598 = vmatpush.msra.mxu0 0.0
      %599 = vmatpush.msra.mxu0 0.0
      %600 = vmatpush.msra.mxu0 0.0
      %601 = vmatpush.msra.mxu0 0.0
      %602 = vmatpush.msra.mxu0 0.0
      %603 = vmatpush.msra.mxu0 0.0
      %604 = vmatpush.msra.mxu0 0.0
      %605 = vmatpush.msra.mxu0 0.0
      %606 = vmatpush.msra.mxu0 0.0
      %607 = vmatpush.msra.mxu0 0.0
      %608 = vmatpush.msra.mxu0 0.0
      %609 = vmatpush.msra.mxu0 0.0
      %610 = vmatpush.msra.mxu0 %v590
      %611 = vmatpush.msra.mxu0 %v589
      %612 = vmatpush.msra.mxu0 %v588
      %613 = vmatpush.msra.mxu0 %v587
      %614 = vmatmul.f32.gmra.mxu0 %v593
      %v615 = vpop.f32.mrf.mxu0
      %v616 = vadd.f32 0.0, %v615
      %617 = vmatmul.f32.gmra.mxu0 %v596
      %v618 = vpop.f32.mrf.mxu0
      %v619 = vadd.f32 0.0, %v618
      %620 = vdwg.mxu0
      %v621 = vld [vmem:[%s1] sm:$0xff]
      %v622 = vld [vmem:[%s1 + $0x8] sm:$0xff]
      %v623 = vld [vmem:[%s1 + $0x10] sm:$0xff]
      %v624 = vld [vmem:[%s1 + $0x18] sm:$0xff]
      %v625 = vld [vmem:[%s1 + $0x20] sm:$0xff]
      %v626 = vld [vmem:[%s1 + $0x28] sm:$0xff]
      %v627 = vld [vmem:[%s1 + $0x30] sm:$0xff]
      %v628 = vld [vmem:[%s2] sm:$0xff]
      %v629 = vld [vmem:[%s2 + $0x8] sm:$0xff]
      %v630 = vld [vmem:[%s2 + $0x10] sm:$0xff]
      %v631 = vld [vmem:[%s2 + $0x18] sm:$0xff]
      %v632 = vld [vmem:[%s2 + $0x20] sm:$0xff]
      %v633 = vld [vmem:[%s2 + $0x28] sm:$0xff]
      %v634 = vld [vmem:[%s2 + $0x30] sm:$0xff]
      %636 = vrot.lane.b32.xlu0 %v616, 64
      %v637 = vpop.permute.xlu0 %636
      %vm639 = vcmask 64512
      %v641 = vsel %vm639, %v628, 0
      %v644 = vsel %vm639, %v629, 0
      %v647 = vsel %vm639, %v630, 0
      %v650 = vsel %vm639, %v631, 0
      %v653 = vsel %vm639, %v632, 0
      %v656 = vsel %vm639, %v633, 0
      %v659 = vsel %vm639, %v634, 0
      %661 = vmatpush.msra.mxu0 0.0
      %662 = vmatpush.msra.mxu0 0.0
      %663 = vmatpush.msra.mxu0 0.0
      %664 = vmatpush.msra.mxu0 0.0
      %665 = vmatpush.msra.mxu0 0.0
      %666 = vmatpush.msra.mxu0 0.0
      %667 = vmatpush.msra.mxu0 0.0
      %668 = vmatpush.msra.mxu0 0.0
      %669 = vmatpush.msra.mxu0 0.0
      %670 = vmatpush.msra.mxu0 0.0
      %671 = vmatpush.msra.mxu0 0.0
      %672 = vmatpush.msra.mxu0 0.0
      %673 = vmatpush.msra.mxu0 0.0
      %674 = vmatpush.msra.mxu0 0.0
      %675 = vmatpush.msra.mxu0 0.0
      %676 = vmatpush.msra.mxu0 %v637
      %677 = vmatmul.f32.gmra.mxu0 %v641
      %v678 = vpop.f32.mrf.mxu0
      %v679 = vadd.f32 0.0, %v678
      %680 = vmatmul.f32.gmra.mxu0 %v644
      %v681 = vpop.f32.mrf.mxu0
      %v682 = vadd.f32 0.0, %v681
      %683 = vmatmul.f32.gmra.mxu0 %v647
      %v684 = vpop.f32.mrf.mxu0
      %v685 = vadd.f32 0.0, %v684
      %686 = vmatmul.f32.gmra.mxu0 %v650
      %v687 = vpop.f32.mrf.mxu0
      %v688 = vadd.f32 0.0, %v687
      %689 = vmatmul.f32.gmra.mxu0 %v653
      %v690 = vpop.f32.mrf.mxu0
      %v691 = vadd.f32 0.0, %v690
      %692 = vmatmul.f32.gmra.mxu0 %v656
      %v693 = vpop.f32.mrf.mxu0
      %v694 = vadd.f32 0.0, %v693
      %695 = vmatmul.f32.gmra.mxu0 %v659
      %v696 = vpop.f32.mrf.mxu0
      %v697 = vadd.f32 0.0, %v696
      %698 = vdwg.mxu0
      %v700 = vsel %vm639, %v621, 0
      %v703 = vsel %vm639, %v622, 0
      %v706 = vsel %vm639, %v623, 0
      %v709 = vsel %vm639, %v624, 0
      %v712 = vsel %vm639, %v625, 0
      %v715 = vsel %vm639, %v626, 0
      %v718 = vsel %vm639, %v627, 0
      %720 = vmatpush.msra.mxu0 0.0
      %721 = vmatpush.msra.mxu0 0.0
      %722 = vmatpush.msra.mxu0 0.0
      %723 = vmatpush.msra.mxu0 0.0
      %724 = vmatpush.msra.mxu0 0.0
      %725 = vmatpush.msra.mxu0 0.0
      %726 = vmatpush.msra.mxu0 0.0
      %727 = vmatpush.msra.mxu0 0.0
      %728 = vmatpush.msra.mxu0 0.0
      %729 = vmatpush.msra.mxu0 0.0
      %730 = vmatpush.msra.mxu0 0.0
      %731 = vmatpush.msra.mxu0 0.0
      %732 = vmatpush.msra.mxu0 0.0
      %733 = vmatpush.msra.mxu0 0.0
      %734 = vmatpush.msra.mxu0 0.0
      %735 = vmatpush.msra.mxu0 %v616
      %736 = vmatmul.f32.gmra.mxu0 %v700
      %v737 = vpop.f32.mrf.mxu0
      %v738 = vadd.f32 %v679, %v737
      %739 = vmatmul.f32.gmra.mxu0 %v703
      %v740 = vpop.f32.mrf.mxu0
      %v741 = vadd.f32 %v682, %v740
      %742 = vmatmul.f32.gmra.mxu0 %v706
      %v743 = vpop.f32.mrf.mxu0
      %v744 = vadd.f32 %v685, %v743
      %745 = vmatmul.f32.gmra.mxu0 %v709
      %v746 = vpop.f32.mrf.mxu0
      %v747 = vadd.f32 %v688, %v746
      %748 = vmatmul.f32.gmra.mxu0 %v712
      %v749 = vpop.f32.mrf.mxu0
      %v750 = vadd.f32 %v691, %v749
      %751 = vmatmul.f32.gmra.mxu0 %v715
      %v752 = vpop.f32.mrf.mxu0
      %v753 = vadd.f32 %v694, %v752
      %754 = vmatmul.f32.gmra.mxu0 %v718
      %v755 = vpop.f32.mrf.mxu0
      %v756 = vadd.f32 %v697, %v755
      %757 = vdwg.mxu0
      %vm758 = vcmask 523264
      %759 = vst.msk [vmem:[#allocation3] sm:$0xff] %vm758, %v738
      %760 = vst.msk [vmem:[#allocation3 + $0x8] sm:$0xff] %vm758, %v741
      %761 = vst.msk [vmem:[#allocation3 + $0x10] sm:$0xff] %vm758, %v744
      %762 = vst.msk [vmem:[#allocation3 + $0x18] sm:$0xff] %vm758, %v747
      %763 = vst.msk [vmem:[#allocation3 + $0x20] sm:$0xff] %vm758, %v750
      %764 = vst.msk [vmem:[#allocation3 + $0x28] sm:$0xff] %vm758, %v753
      %765 = vst.msk [vmem:[#allocation3 + $0x30] sm:$0xff] %vm758, %v756
      %v766 = vld [vmem:[%s1] sm:$0xff]
      %v767 = vld [vmem:[%s1 + $0x8] sm:$0xff]
      %v768 = vld [vmem:[%s1 + $0x10] sm:$0xff]
      %v769 = vld [vmem:[%s1 + $0x18] sm:$0xff]
      %v770 = vld [vmem:[%s1 + $0x20] sm:$0xff]
      %v771 = vld [vmem:[%s1 + $0x28] sm:$0xff]
      %v772 = vld [vmem:[%s1 + $0x30] sm:$0xff]
      %v773 = vld [vmem:[%s2] sm:$0xff]
      %v774 = vld [vmem:[%s2 + $0x8] sm:$0xff]
      %v775 = vld [vmem:[%s2 + $0x10] sm:$0xff]
      %v776 = vld [vmem:[%s2 + $0x18] sm:$0xff]
      %v777 = vld [vmem:[%s2 + $0x20] sm:$0xff]
      %v778 = vld [vmem:[%s2 + $0x28] sm:$0xff]
      %v779 = vld [vmem:[%s2 + $0x30] sm:$0xff]
      %781 = vrot.lane.b32.xlu0 %v619, 64
      %v782 = vpop.permute.xlu0 %781
      %v785 = vsel %vm639, %v773, 0
      %v788 = vsel %vm639, %v774, 0
      %v791 = vsel %vm639, %v775, 0
      %v794 = vsel %vm639, %v776, 0
      %v797 = vsel %vm639, %v777, 0
      %v800 = vsel %vm639, %v778, 0
      %v803 = vsel %vm639, %v779, 0
      %805 = vmatpush.msra.mxu0 0.0
      %806 = vmatpush.msra.mxu0 0.0
      %807 = vmatpush.msra.mxu0 0.0
      %808 = vmatpush.msra.mxu0 0.0
      %809 = vmatpush.msra.mxu0 0.0
      %810 = vmatpush.msra.mxu0 0.0
      %811 = vmatpush.msra.mxu0 0.0
      %812 = vmatpush.msra.mxu0 0.0
      %813 = vmatpush.msra.mxu0 0.0
      %814 = vmatpush.msra.mxu0 0.0
      %815 = vmatpush.msra.mxu0 0.0
      %816 = vmatpush.msra.mxu0 0.0
      %817 = vmatpush.msra.mxu0 0.0
      %818 = vmatpush.msra.mxu0 0.0
      %819 = vmatpush.msra.mxu0 0.0
      %820 = vmatpush.msra.mxu0 %v782
      %821 = vmatmul.f32.gmra.mxu0 %v785
      %v822 = vpop.f32.mrf.mxu0
      %v823 = vadd.f32 0.0, %v822
      %824 = vmatmul.f32.gmra.mxu0 %v788
      %v825 = vpop.f32.mrf.mxu0
      %v826 = vadd.f32 0.0, %v825
      %827 = vmatmul.f32.gmra.mxu0 %v791
      %v828 = vpop.f32.mrf.mxu0
      %v829 = vadd.f32 0.0, %v828
      %830 = vmatmul.f32.gmra.mxu0 %v794
      %v831 = vpop.f32.mrf.mxu0
      %v832 = vadd.f32 0.0, %v831
      %833 = vmatmul.f32.gmra.mxu0 %v797
      %v834 = vpop.f32.mrf.mxu0
      %v835 = vadd.f32 0.0, %v834
      %836 = vmatmul.f32.gmra.mxu0 %v800
      %v837 = vpop.f32.mrf.mxu0
      %v838 = vadd.f32 0.0, %v837
      %839 = vmatmul.f32.gmra.mxu0 %v803
      %v840 = vpop.f32.mrf.mxu0
      %v841 = vadd.f32 0.0, %v840
      %842 = vdwg.mxu0
      %v844 = vsel %vm639, %v766, 0
      %v847 = vsel %vm639, %v767, 0
      %v850 = vsel %vm639, %v768, 0
      %v853 = vsel %vm639, %v769, 0
      %v856 = vsel %vm639, %v770, 0
      %v859 = vsel %vm639, %v771, 0
      %v862 = vsel %vm639, %v772, 0
      %864 = vmatpush.msra.mxu0 0.0
      %865 = vmatpush.msra.mxu0 0.0
      %866 = vmatpush.msra.mxu0 0.0
      %867 = vmatpush.msra.mxu0 0.0
      %868 = vmatpush.msra.mxu0 0.0
      %869 = vmatpush.msra.mxu0 0.0
      %870 = vmatpush.msra.mxu0 0.0
      %871 = vmatpush.msra.mxu0 0.0
      %872 = vmatpush.msra.mxu0 0.0
      %873 = vmatpush.msra.mxu0 0.0
      %874 = vmatpush.msra.mxu0 0.0
      %875 = vmatpush.msra.mxu0 0.0
      %876 = vmatpush.msra.mxu0 0.0
      %877 = vmatpush.msra.mxu0 0.0
      %878 = vmatpush.msra.mxu0 0.0
      %879 = vmatpush.msra.mxu0 %v619
      %880 = vmatmul.f32.gmra.mxu0 %v844
      %v881 = vpop.f32.mrf.mxu0
      %v882 = vadd.f32 %v823, %v881
      %883 = vmatmul.f32.gmra.mxu0 %v847
      %v884 = vpop.f32.mrf.mxu0
      %v885 = vadd.f32 %v826, %v884
      %886 = vmatmul.f32.gmra.mxu0 %v850
      %v887 = vpop.f32.mrf.mxu0
      %v888 = vadd.f32 %v829, %v887
      %889 = vmatmul.f32.gmra.mxu0 %v853
      %v890 = vpop.f32.mrf.mxu0
      %v891 = vadd.f32 %v832, %v890
      %892 = vmatmul.f32.gmra.mxu0 %v856
      %v893 = vpop.f32.mrf.mxu0
      %v894 = vadd.f32 %v835, %v893
      %895 = vmatmul.f32.gmra.mxu0 %v859
      %v896 = vpop.f32.mrf.mxu0
      %v897 = vadd.f32 %v838, %v896
      %898 = vmatmul.f32.gmra.mxu0 %v862
      %v899 = vpop.f32.mrf.mxu0
      %v900 = vadd.f32 %v841, %v899
      %901 = vdwg.mxu0
      %902 = vst.msk [vmem:[#allocation3 + $0x38] sm:$0xff] %vm758, %v882
      %903 = vst.msk [vmem:[#allocation3 + $0x40] sm:$0xff] %vm758, %v885
      %904 = vst.msk [vmem:[#allocation3 + $0x48] sm:$0xff] %vm758, %v888
      %905 = vst.msk [vmem:[#allocation3 + $0x50] sm:$0xff] %vm758, %v891
      %906 = vst.msk [vmem:[#allocation3 + $0x58] sm:$0xff] %vm758, %v894
      %907 = vst.msk [vmem:[#allocation3 + $0x60] sm:$0xff] %vm758, %v897
      %908 = vst.msk [vmem:[#allocation3 + $0x68] sm:$0xff] %vm758, %v900
      %v909 = vld [vmem:[#allocation3] sm:$0xff]
      %v910 = vld [vmem:[#allocation3 + $0x8] sm:$0xff]
      %v911 = vld [vmem:[#allocation3 + $0x10] sm:$0xff]
      %v912 = vld [vmem:[#allocation3 + $0x18] sm:$0xff]
      %v913 = vld [vmem:[#allocation3 + $0x20] sm:$0xff]
      %v914 = vld [vmem:[#allocation3 + $0x28] sm:$0xff]
      %v915 = vld [vmem:[#allocation3 + $0x30] sm:$0xff]
      %v916 = vld [vmem:[#allocation3 + $0x38] sm:$0xff]
      %v917 = vld [vmem:[#allocation3 + $0x40] sm:$0xff]
      %v918 = vld [vmem:[#allocation3 + $0x48] sm:$0xff]
      %v919 = vld [vmem:[#allocation3 + $0x50] sm:$0xff]
      %v920 = vld [vmem:[#allocation3 + $0x58] sm:$0xff]
      %v921 = vld [vmem:[#allocation3 + $0x60] sm:$0xff]
      %v922 = vld [vmem:[#allocation3 + $0x68] sm:$0xff]
      %v923 = vld [vmem:[%s6] sm:$0x1]
      %v925 = vperm.slane %v923, 0
      %v927 = vadd.f32 %v909, %v925
      %v928 = vadd.f32 %v910, %v925
      %v929 = vadd.f32 %v911, %v925
      %v930 = vadd.f32 %v912, %v925
      %v931 = vadd.f32 %v913, %v925
      %v932 = vadd.f32 %v914, %v925
      %v933 = vadd.f32 %v915, %v925
      %v934 = vadd.f32 %v916, %v925
      %v935 = vadd.f32 %v917, %v925
      %v936 = vadd.f32 %v918, %v925
      %v937 = vadd.f32 %v919, %v925
      %v938 = vadd.f32 %v920, %v925
      %v939 = vadd.f32 %v921, %v925
      %v940 = vadd.f32 %v922, %v925
      %v941 = vtanh.pop %v927
      %v942 = vtanh.pop %v928
      %v943 = vtanh.pop %v929
      %v944 = vtanh.pop %v930
      %v945 = vtanh.pop %v931
      %v946 = vtanh.pop %v932
      %v947 = vtanh.pop %v933
      %v948 = vtanh.pop %v934
      %v949 = vtanh.pop %v935
      %v950 = vtanh.pop %v936
      %v951 = vtanh.pop %v937
      %v952 = vtanh.pop %v938
      %v953 = vtanh.pop %v939
      %v954 = vtanh.pop %v940
      %v955 = vld [vmem:[%s7] sm:$0xff]
      %v956 = vld [vmem:[%s7 + $0x8] sm:$0xff]
      %v957 = vld [vmem:[%s7 + $0x10] sm:$0xff]
      %v958 = vld [vmem:[%s7 + $0x18] sm:$0xff]
      %v959 = vld [vmem:[%s7 + $0x20] sm:$0xff]
      %v960 = vld [vmem:[%s7 + $0x28] sm:$0xff]
      %v961 = vld [vmem:[%s7 + $0x30] sm:$0xff]
      %v962 = vld [vmem:[%s7 + $0x38] sm:$0xff]
      %v963 = vld [vmem:[%s8] sm:$0x1]
      %v965 = vperm.slane %v963, 0
      %v968 = vsel %vm758, %v941, 0
      %v971 = vsel %vm758, %v942, 0
      %v974 = vsel %vm758, %v943, 0
      %v977 = vsel %vm758, %v944, 0
      %v980 = vsel %vm758, %v945, 0
      %v983 = vsel %vm758, %v946, 0
      %v986 = vsel %vm758, %v947, 0
      %v989 = vsel %vm758, %v948, 0
      %v992 = vsel %vm758, %v949, 0
      %v995 = vsel %vm758, %v950, 0
      %v998 = vsel %vm758, %v951, 0
      %v1001 = vsel %vm758, %v952, 0
      %v1004 = vsel %vm758, %v953, 0
      %v1007 = vsel %vm758, %v954, 0
      %1009 = vmatpush.msra.mxu0 0.0
      %1010 = vmatpush.msra.mxu0 0.0
      %1011 = vmatpush.msra.mxu0 0.0
      %1012 = vmatpush.msra.mxu0 0.0
      %1013 = vmatpush.msra.mxu0 0.0
      %1014 = vmatpush.msra.mxu0 0.0
      %1015 = vmatpush.msra.mxu0 0.0
      %1016 = vmatpush.msra.mxu0 0.0
      %1017 = vmatpush.msra.mxu0 %v962
      %1018 = vmatpush.msra.mxu0 %v961
      %1019 = vmatpush.msra.mxu0 %v960
      %1020 = vmatpush.msra.mxu0 %v959
      %1021 = vmatpush.msra.mxu0 %v958
      %1022 = vmatpush.msra.mxu0 %v957
      %1023 = vmatpush.msra.mxu0 %v956
      %1024 = vmatpush.msra.mxu0 %v955
      %1025 = vmatmul.f32.gmra.mxu0 %v968
      %v1026 = vpop.f32.mrf.mxu0
      %v1027 = vadd.f32 %v965, %v1026
      %1028 = vmatmul.f32.gmra.mxu0 %v971
      %v1029 = vpop.f32.mrf.mxu0
      %v1030 = vadd.f32 %v965, %v1029
      %1031 = vmatmul.f32.gmra.mxu0 %v974
      %v1032 = vpop.f32.mrf.mxu0
      %v1033 = vadd.f32 %v965, %v1032
      %1034 = vmatmul.f32.gmra.mxu0 %v977
      %v1035 = vpop.f32.mrf.mxu0
      %v1036 = vadd.f32 %v965, %v1035
      %1037 = vmatmul.f32.gmra.mxu0 %v980
      %v1038 = vpop.f32.mrf.mxu0
      %v1039 = vadd.f32 %v965, %v1038
      %1040 = vmatmul.f32.gmra.mxu0 %v983
      %v1041 = vpop.f32.mrf.mxu0
      %v1042 = vadd.f32 %v965, %v1041
      %1043 = vmatmul.f32.gmra.mxu0 %v986
      %v1044 = vpop.f32.mrf.mxu0
      %v1045 = vadd.f32 %v965, %v1044
      %1046 = vmatmul.f32.gmra.mxu0 %v989
      %v1047 = vpop.f32.mrf.mxu0
      %v1048 = vadd.f32 %v965, %v1047
      %1049 = vmatmul.f32.gmra.mxu0 %v992
      %v1050 = vpop.f32.mrf.mxu0
      %v1051 = vadd.f32 %v965, %v1050
      %1052 = vmatmul.f32.gmra.mxu0 %v995
      %v1053 = vpop.f32.mrf.mxu0
      %v1054 = vadd.f32 %v965, %v1053
      %1055 = vmatmul.f32.gmra.mxu0 %v998
      %v1056 = vpop.f32.mrf.mxu0
      %v1057 = vadd.f32 %v965, %v1056
      %1058 = vmatmul.f32.gmra.mxu0 %v1001
      %v1059 = vpop.f32.mrf.mxu0
      %v1060 = vadd.f32 %v965, %v1059
      %1061 = vmatmul.f32.gmra.mxu0 %v1004
      %v1062 = vpop.f32.mrf.mxu0
      %v1063 = vadd.f32 %v965, %v1062
      %1064 = vmatmul.f32.gmra.mxu0 %v1007
      %v1065 = vpop.f32.mrf.mxu0
      %v1066 = vadd.f32 %v965, %v1065
      %1067 = vdwg.mxu0
      %v1068 = vtanh.pop %v1027
      %v1069 = vtanh.pop %v1030
      %v1070 = vtanh.pop %v1033
      %v1071 = vtanh.pop %v1036
      %v1072 = vtanh.pop %v1039
      %v1073 = vtanh.pop %v1042
      %v1074 = vtanh.pop %v1045
      %v1075 = vtanh.pop %v1048
      %v1076 = vtanh.pop %v1051
      %v1077 = vtanh.pop %v1054
      %v1078 = vtanh.pop %v1057
      %v1079 = vtanh.pop %v1060
      %v1080 = vtanh.pop %v1063
      %v1081 = vtanh.pop %v1066
      %v1082 = vld [vmem:[%s4] sm:$0xff]
      %v1083 = vld [vmem:[%s4 + $0x8] sm:$0xff]
      %v1084 = vld [vmem:[%s4 + $0x10] sm:$0xff]
      %v1085 = vld [vmem:[%s4 + $0x18] sm:$0xff]
      %v1086 = vld [vmem:[%s4 + $0x20] sm:$0xff]
      %v1087 = vld [vmem:[%s4 + $0x28] sm:$0xff]
      %v1088 = vld [vmem:[%s4 + $0x30] sm:$0xff]
      %v1089 = vld [vmem:[%s4 + $0x38] sm:$0xff]
      %v1090 = vld [vmem:[%s4 + $0x40] sm:$0xff]
      %v1091 = vld [vmem:[%s4 + $0x48] sm:$0xff]
      %v1092 = vld [vmem:[%s4 + $0x50] sm:$0xff]
      %v1093 = vld [vmem:[%s4 + $0x58] sm:$0xff]
      %v1094 = vld [vmem:[%s4 + $0x60] sm:$0xff]
      %v1095 = vld [vmem:[%s4 + $0x68] sm:$0xff]
      %v1096 = vmul.f32 %v1068, %v1082
      %v1097 = vmul.f32 %v1069, %v1083
      %v1098 = vmul.f32 %v1070, %v1084
      %v1099 = vmul.f32 %v1071, %v1085
      %v1100 = vmul.f32 %v1072, %v1086
      %v1101 = vmul.f32 %v1073, %v1087
      %v1102 = vmul.f32 %v1074, %v1088
      %v1103 = vmul.f32 %v1075, %v1089
      %v1104 = vmul.f32 %v1076, %v1090
      %v1105 = vmul.f32 %v1077, %v1091
      %v1106 = vmul.f32 %v1078, %v1092
      %v1107 = vmul.f32 %v1079, %v1093
      %v1108 = vmul.f32 %v1080, %v1094
      %v1109 = vmul.f32 %v1081, %v1095
      %1124 = vrot.lane.b32.xlu0 %v1096, 96
      %v1125 = vpop.permute.xlu0 %1124
      %1126 = vrot.lane.b32.xlu0 %v1097, 96
      %v1127 = vpop.permute.xlu0 %1126
      %1128 = vrot.lane.b32.xlu0 %v1098, 96
      %v1129 = vpop.permute.xlu0 %1128
      %1130 = vrot.lane.b32.xlu0 %v1099, 96
      %v1131 = vpop.permute.xlu0 %1130
      %1132 = vrot.lane.b32.xlu0 %v1100, 96
      %v1133 = vpop.permute.xlu0 %1132
      %1134 = vrot.lane.b32.xlu0 %v1101, 96
      %v1135 = vpop.permute.xlu0 %1134
      %1136 = vrot.lane.b32.xlu0 %v1102, 96
      %v1137 = vpop.permute.xlu0 %1136
      %1138 = vrot.lane.b32.xlu0 %v1103, 96
      %v1139 = vpop.permute.xlu0 %1138
      %1140 = vrot.lane.b32.xlu0 %v1104, 96
      %v1141 = vpop.permute.xlu0 %1140
      %1142 = vrot.lane.b32.xlu0 %v1105, 96
      %v1143 = vpop.permute.xlu0 %1142
      %1144 = vrot.lane.b32.xlu0 %v1106, 96
      %v1145 = vpop.permute.xlu0 %1144
      %1146 = vrot.lane.b32.xlu0 %v1107, 96
      %v1147 = vpop.permute.xlu0 %1146
      %1148 = vrot.lane.b32.xlu0 %v1108, 96
      %v1149 = vpop.permute.xlu0 %1148
      %1150 = vrot.lane.b32.xlu0 %v1109, 96
      %v1151 = vpop.permute.xlu0 %1150
      %v1166 = vadd.f32 %v1096, %v1125
      %v1167 = vadd.f32 %v1097, %v1127
      %v1168 = vadd.f32 %v1098, %v1129
      %v1169 = vadd.f32 %v1099, %v1131
      %v1170 = vadd.f32 %v1100, %v1133
      %v1171 = vadd.f32 %v1101, %v1135
      %v1172 = vadd.f32 %v1102, %v1137
      %v1173 = vadd.f32 %v1103, %v1139
      %v1174 = vadd.f32 %v1104, %v1141
      %v1175 = vadd.f32 %v1105, %v1143
      %v1176 = vadd.f32 %v1106, %v1145
      %v1177 = vadd.f32 %v1107, %v1147
      %v1178 = vadd.f32 %v1108, %v1149
      %v1179 = vadd.f32 %v1109, %v1151
      %v1180 = vld [vmem:[%s3] sm:$0xff]
      %vm1181 = vcmask 457728
      %v1183 = vsel %vm1181, %v1180, 0
      %1185 = vmatpush.msra.mxu0 0.0
      %1186 = vmatpush.msra.mxu0 0.0
      %1187 = vmatpush.msra.mxu0 0.0
      %1188 = vmatpush.msra.mxu0 0.0
      %1189 = vmatpush.msra.mxu0 0.0
      %1190 = vmatpush.msra.mxu0 0.0
      %1191 = vmatpush.msra.mxu0 0.0
      %1192 = vmatpush.msra.mxu0 0.0
      %1193 = vmatpush.msra.mxu0 0.0
      %1194 = vmatpush.msra.mxu0 %v1172
      %1195 = vmatpush.msra.mxu0 %v1171
      %1196 = vmatpush.msra.mxu0 %v1170
      %1197 = vmatpush.msra.mxu0 %v1169
      %1198 = vmatpush.msra.mxu0 %v1168
      %1199 = vmatpush.msra.mxu0 %v1167
      %1200 = vmatpush.msra.mxu0 %v1166
      %1201 = vmatmul.f32.gmra.mxu0 %v1183
      %v1202 = vpop.f32.mrf.mxu0
      %v1203 = vadd.f32 0.0, %v1202
      %1204 = vdwg.mxu0
      %1205 = vst.msk [vmem:[#allocation4] sm:$0xff] %vm591, %v1203
      %v1206 = vld [vmem:[%s3] sm:$0xff]
      %v1208 = vsel %vm1181, %v1206, 0
      %1210 = vmatpush.msra.mxu0 0.0
      %1211 = vmatpush.msra.mxu0 0.0
      %1212 = vmatpush.msra.mxu0 0.0
      %1213 = vmatpush.msra.mxu0 0.0
      %1214 = vmatpush.msra.mxu0 0.0
      %1215 = vmatpush.msra.mxu0 0.0
      %1216 = vmatpush.msra.mxu0 0.0
      %1217 = vmatpush.msra.mxu0 0.0
      %1218 = vmatpush.msra.mxu0 0.0
      %1219 = vmatpush.msra.mxu0 %v1179
      %1220 = vmatpush.msra.mxu0 %v1178
      %1221 = vmatpush.msra.mxu0 %v1177
      %1222 = vmatpush.msra.mxu0 %v1176
      %1223 = vmatpush.msra.mxu0 %v1175
      %1224 = vmatpush.msra.mxu0 %v1174
      %1225 = vmatpush.msra.mxu0 %v1173
      %1226 = vmatmul.f32.gmra.mxu0 %v1208
      %v1227 = vpop.f32.mrf.mxu0
      %v1228 = vadd.f32 0.0, %v1227
      %1229 = vdwg.mxu0
      %1230 = vst.msk [vmem:[#allocation4 + $0x8] sm:$0xff] %vm591, %v1228
      %v1231 = vld [vmem:[#allocation4] sm:$0xff]
      %v1232 = vld [vmem:[#allocation4 + $0x8] sm:$0xff]
      %v1233 = vld [vmem:[%s10] sm:$0xf]
      %v1234 = vld [vmem:[%s11] sm:$0x1]
      %v1236 = vperm.slane %v1234, 0
      %vm1238 = vcmask 31744
      %v1240 = vsel %vm1238, %v583, 0
      %v1243 = vsel %vm1238, %v584, 0
      %vm1245 = vcmask 1043456
      %v1247 = vsel %vm1245, %v1233, 0
      %1249 = vmatpush.msra.mxu0 0.0
      %1250 = vmatpush.msra.mxu0 0.0
      %1251 = vmatpush.msra.mxu0 0.0
      %1252 = vmatpush.msra.mxu0 0.0
      %1253 = vmatpush.msra.mxu0 0.0
      %1254 = vmatpush.msra.mxu0 0.0
      %1255 = vmatpush.msra.mxu0 0.0
      %1256 = vmatpush.msra.mxu0 0.0
      %1257 = vmatpush.msra.mxu0 0.0
      %1258 = vmatpush.msra.mxu0 0.0
      %1259 = vmatpush.msra.mxu0 0.0
      %1260 = vmatpush.msra.mxu0 0.0
      %1261 = vmatpush.msra.mxu0 0.0
      %1262 = vmatpush.msra.mxu0 0.0
      %1263 = vmatpush.msra.mxu0 0.0
      %1264 = vmatpush.msra.mxu0 %v1247
      %1265 = vmatmul.f32.gmra.mxu0 %v1240
      %v1266 = vpop.f32.mrf.mxu0
      %v1267 = vadd.f32 %v1236, %v1266
      %1268 = vmatmul.f32.gmra.mxu0 %v1243
      %v1269 = vpop.f32.mrf.mxu0
      %v1270 = vadd.f32 %v1236, %v1269
      %1271 = vdwg.mxu0
      %v1272 = vld [vmem:[%s9] sm:$0xff]
      %v1273 = vld [vmem:[%s9 + $0x8] sm:$0xff]
      %v1274 = vld [vmem:[%s9 + $0x10] sm:$0xff]
      %v1275 = vld [vmem:[%s9 + $0x18] sm:$0xff]
      %v1277 = vsel %vm591, %v1231, 0
      %v1280 = vsel %vm591, %v1232, 0
      %1282 = vmatpush.msra.mxu0 0.0
      %1283 = vmatpush.msra.mxu0 0.0
      %1284 = vmatpush.msra.mxu0 0.0
      %1285 = vmatpush.msra.mxu0 0.0
      %1286 = vmatpush.msra.mxu0 0.0
      %1287 = vmatpush.msra.mxu0 0.0
      %1288 = vmatpush.msra.mxu0 0.0
      %1289 = vmatpush.msra.mxu0 0.0
      %1290 = vmatpush.msra.mxu0 0.0
      %1291 = vmatpush.msra.mxu0 0.0
      %1292 = vmatpush.msra.mxu0 0.0
      %1293 = vmatpush.msra.mxu0 0.0
      %1294 = vmatpush.msra.mxu0 %v1275
      %1295 = vmatpush.msra.mxu0 %v1274
      %1296 = vmatpush.msra.mxu0 %v1273
      %1297 = vmatpush.msra.mxu0 %v1272
      %1298 = vmatmul.f32.gmra.mxu0 %v1277
      %v1299 = vpop.f32.mrf.mxu0
      %v1300 = vadd.f32 0.0, %v1299
      %1301 = vmatmul.f32.gmra.mxu0 %v1280
      %v1302 = vpop.f32.mrf.mxu0
      %v1303 = vadd.f32 0.0, %v1302
      %1304 = vdwg.mxu0
      %v1305 = vadd.f32 %v1267, %v1300
      %v1306 = vadd.f32 %v1270, %v1303
      %v1307 = vxor.u32 %v1305, 2147483648
      %v1308 = vxor.u32 %v1306, 2147483648
      %v1309 = vmul.f32 %v1307, 1.442695
      %v1310 = vpow.pop %v1309
      %v1311 = vmul.f32 %v1308, 1.442695
      %v1312 = vpow.pop %v1311
      %v1313 = vadd.f32 %v1310, 1.0
      %v1314 = vadd.f32 %v1312, 1.0
      %v1315 = vrcp.pop %v1313
      %v1316 = vmul.f32 %v1313, %v1315
      %v1317 = vsub.f32 1.0, %v1316
      %v1318 = vmul.f32 %v1315, %v1317
      %v1319 = vadd.f32 %v1315, %v1318
      %vm1320 = vweird.f32 %v1313
      %vm1321 = vweird.f32 %v1315
      %vm1322 = vmor %vm1320, %vm1321
      %v1323 = vsel %vm1322, %v1315, %v1319
      %v1324 = vand.u32 2147483647, %v1313
      %vm1325 = vcmp.eq.f32.partialorder %v1324, 8.507059e+37
      %v1326 = vand.u32 %v1313, 2147483648
      %v1327 = vor.u32 1.1754944e-38, %v1326
      %v1328 = vsel %vm1325, %v1327, %v1323
      %v1329 = vmul.f32 1.0, %v1328
      %v1330 = vrcp.pop %v1314
      %v1331 = vmul.f32 %v1314, %v1330
      %v1332 = vsub.f32 1.0, %v1331
      %v1333 = vmul.f32 %v1330, %v1332
      %v1334 = vadd.f32 %v1330, %v1333
      %vm1335 = vweird.f32 %v1314
      %vm1336 = vweird.f32 %v1330
      %vm1337 = vmor %vm1335, %vm1336
      %v1338 = vsel %vm1337, %v1330, %v1334
      %v1339 = vand.u32 2147483647, %v1314
      %vm1340 = vcmp.eq.f32.partialorder %v1339, 8.507059e+37
      %v1341 = vand.u32 %v1314, 2147483648
      %v1342 = vor.u32 1.1754944e-38, %v1341
      %v1343 = vsel %vm1340, %v1342, %v1338
      %v1344 = vmul.f32 1.0, %v1343
      %1347 = vrot.lane.b32.xlu0 %v1300, 64
      %v1348 = vpop.permute.xlu0 %1347
      %1349 = vrot.lane.b32.xlu0 %v1303, 64
      %v1350 = vpop.permute.xlu0 %1349
      %v1353 = vmul.f32 %v1329, %v1348
      %v1354 = vmul.f32 %v1344, %v1350
      %1357 = vrot.lane.b32.xlu0 %v1353, 64
      %v1358 = vpop.permute.xlu0 %1357
      %1359 = vrot.lane.b32.xlu0 %v1354, 64
      %v1360 = vpop.permute.xlu0 %1359
      %v1363 = vadd.f32 %v1267, %v1358
      %v1364 = vadd.f32 %v1270, %v1360
      %v1365 = vtanh.pop %v1363
      %v1366 = vtanh.pop %v1364
      %v1367 = vsub.f32 1.0, %v1329
      %v1368 = vsub.f32 1.0, %v1344
      %1371 = vrot.lane.b32.xlu0 %v1365, 96
      %v1372 = vpop.permute.xlu0 %1371
      %1373 = vrot.lane.b32.xlu0 %v1366, 96
      %v1374 = vpop.permute.xlu0 %1373
      %v1377 = vmul.f32 %v1367, %v1372
      %v1378 = vmul.f32 %v1368, %v1374
      %1379 = vrot.lane.b32.xlu0 %v585, 32
      %v1380 = vpop.permute.xlu0 %1379
      %1381 = vrot.lane.b32.xlu0 %v586, 32
      %v1382 = vpop.permute.xlu0 %1381
      %v1385 = vmul.f32 %v1329, %v1380
      %v1386 = vmul.f32 %v1344, %v1382
      %v1387 = vadd.f32 %v1377, %v1385
      %v1388 = vadd.f32 %v1378, %v1386
      %1391 = vrot.lane.b32.xlu0 %v1387, 96
      %v1392 = vpop.permute.xlu0 %1391
      %1393 = vrot.lane.b32.xlu0 %v1388, 96
      %v1394 = vpop.permute.xlu0 %1393
      %1397 = vst.msk [vmem:[#allocation2] sm:$0xff] %vm591, %v1392
      %1398 = vst.msk [vmem:[#allocation2 + $0x8] sm:$0xff] %vm591, %v1394
      %v1399 = vld [vmem:[%s12] sm:$0xff]
      %v1400 = vld [vmem:[%s12 + $0x8] sm:$0xff]
      %v1401 = vld [vmem:[%s12 + $0x10] sm:$0xff]
      %v1402 = vld [vmem:[%s12 + $0x18] sm:$0xff]
      %v1403 = vld [vmem:[%s13] sm:$0x1]
      %v1405 = vperm.slane %v1403, 0
      %v1407 = vsel %vm591, %v1392, 0
      %v1409 = vsel %vm591, %v1394, 0
      %1411 = vmatpush.msra.mxu0 0.0
      %1412 = vmatpush.msra.mxu0 0.0
      %1413 = vmatpush.msra.mxu0 0.0
      %1414 = vmatpush.msra.mxu0 0.0
      %1415 = vmatpush.msra.mxu0 0.0
      %1416 = vmatpush.msra.mxu0 0.0
      %1417 = vmatpush.msra.mxu0 0.0
      %1418 = vmatpush.msra.mxu0 0.0
      %1419 = vmatpush.msra.mxu0 0.0
      %1420 = vmatpush.msra.mxu0 0.0
      %1421 = vmatpush.msra.mxu0 0.0
      %1422 = vmatpush.msra.mxu0 0.0
      %1423 = vmatpush.msra.mxu0 %v1402
      %1424 = vmatpush.msra.mxu0 %v1401
      %1425 = vmatpush.msra.mxu0 %v1400
      %1426 = vmatpush.msra.mxu0 %v1399
      %1427 = vmatmul.f32.gmra.mxu0 %v1407
      %v1428 = vpop.f32.mrf.mxu0
      %v1429 = vadd.f32 %v1405, %v1428
      %1430 = vmatmul.f32.gmra.mxu0 %v1409
      %v1431 = vpop.f32.mrf.mxu0
      %v1432 = vadd.f32 %v1405, %v1431
      %1433 = vdwg.mxu0
      %v1434 = vmax.f32 %v1429, 0.0
      %v1435 = vmax.f32 %v1432, 0.0
      %v1436 = vld [vmem:[%s14] sm:$0xff]
      %v1437 = vld [vmem:[%s14 + $0x8] sm:$0xff]
      %v1438 = vld [vmem:[%s14 + $0x10] sm:$0xff]
      %v1439 = vld [vmem:[%s14 + $0x18] sm:$0xff]
      %v1440 = vld [vmem:[%s15] sm:$0x1]
      %v1442 = vperm.slane %v1440, 0
      %v1445 = vsel %vm591, %v1434, 0
      %v1448 = vsel %vm591, %v1435, 0
      %1450 = vmatpush.msra.mxu0 0.0
      %1451 = vmatpush.msra.mxu0 0.0
      %1452 = vmatpush.msra.mxu0 0.0
      %1453 = vmatpush.msra.mxu0 0.0
      %1454 = vmatpush.msra.mxu0 0.0
      %1455 = vmatpush.msra.mxu0 0.0
      %1456 = vmatpush.msra.mxu0 0.0
      %1457 = vmatpush.msra.mxu0 0.0
      %1458 = vmatpush.msra.mxu0 0.0
      %1459 = vmatpush.msra.mxu0 0.0
      %1460 = vmatpush.msra.mxu0 0.0
      %1461 = vmatpush.msra.mxu0 0.0
      %1462 = vmatpush.msra.mxu0 %v1439
      %1463 = vmatpush.msra.mxu0 %v1438
      %1464 = vmatpush.msra.mxu0 %v1437
      %1465 = vmatpush.msra.mxu0 %v1436
      %1466 = vmatmul.f32.gmra.mxu0 %v1445
      %v1467 = vpop.f32.mrf.mxu0
      %v1468 = vadd.f32 %v1442, %v1467
      %1469 = vmatmul.f32.gmra.mxu0 %v1448
      %v1470 = vpop.f32.mrf.mxu0
      %v1471 = vadd.f32 %v1442, %v1470
      %1472 = vdwg.mxu0
      %v1473 = vmax.f32 %v1468, 0.0
      %v1474 = vmax.f32 %v1471, 0.0
      %v1475 = vld [vmem:[%s16] sm:$0xff]
      %v1476 = vld [vmem:[%s16 + $0x8] sm:$0xff]
      %v1477 = vld [vmem:[%s16 + $0x10] sm:$0xff]
      %v1478 = vld [vmem:[%s16 + $0x18] sm:$0xff]
      %v1479 = vld [vmem:[%s17] sm:$0x1]
      %v1481 = vperm.slane %v1479, 0
      %v1484 = vsel %vm591, %v1473, 0
      %v1487 = vsel %vm591, %v1474, 0
      %1489 = vmatpush.msra.mxu0 0.0
      %1490 = vmatpush.msra.mxu0 0.0
      %1491 = vmatpush.msra.mxu0 0.0
      %1492 = vmatpush.msra.mxu0 0.0
      %1493 = vmatpush.msra.mxu0 0.0
      %1494 = vmatpush.msra.mxu0 0.0
      %1495 = vmatpush.msra.mxu0 0.0
      %1496 = vmatpush.msra.mxu0 0.0
      %1497 = vmatpush.msra.mxu0 0.0
      %1498 = vmatpush.msra.mxu0 0.0
      %1499 = vmatpush.msra.mxu0 0.0
      %1500 = vmatpush.msra.mxu0 0.0
      %1501 = vmatpush.msra.mxu0 %v1478
      %1502 = vmatpush.msra.mxu0 %v1477
      %1503 = vmatpush.msra.mxu0 %v1476
      %1504 = vmatpush.msra.mxu0 %v1475
      %1505 = vmatmul.f32.gmra.mxu0 %v1484
      %v1506 = vpop.f32.mrf.mxu0
      %v1507 = vadd.f32 %v1481, %v1506
      %1508 = vmatmul.f32.gmra.mxu0 %v1487
      %v1509 = vpop.f32.mrf.mxu0
      %v1510 = vadd.f32 %v1481, %v1509
      %1511 = vdwg.mxu0
      %v1512 = vadd.f32 %v583, %v1507
      %v1513 = vadd.f32 %v584, %v1510
      %1514 = vst.msk [vmem:[%s575] sm:$0xff] %vm1238, %v1512
      %1515 = vst.msk [vmem:[%s575 + $0x8] sm:$0xff] %vm1238, %v1513
      %p1516 = scmp.lt.s32.totalorder %s29, 6
      %s1517 = scalar_select %p1516, %s29, 6
      %s1518 = smul.addr %s1517, 2
      %s1519 = smul.addr %s1518, 8
      %s1520 = scalar_lea.vmem %s18, %s1519
      // Predicated region
      $region97: #{tpu_custom_call.1} parent=91 // pred_check
        %p1521 = pneg %p430
      $region98: #{tpu_custom_call.1} parent=91 // pred_check_branch
        %1523 = sbr.rel (%p1521) target = $region100
      $region99: #{tpu_custom_call.1} parent=91 // pred_region
        _
      $region100: #{tpu_custom_call.1} parent=91 // pred_fallthru
        _
    $region92: #{tpu_custom_call.1} parent=5 // pred_fallthru
      _
    %p1524 = scmp.le.s32.totalorder 2, %s24
    // Predicated region
    $region101: #{tpu_custom_call.1} parent=5 // pred_check
      %p1525 = pneg %p1524
    $region102: #{tpu_custom_call.1} parent=5 // pred_check_branch
      %1527 = sbr.rel (%p1525) target = $region104
    $region103: #{tpu_custom_call.1} parent=5 // pred_region
      %s1528 = ssub.s32 %s24, 2
      // Predicated region
      $region105: #{tpu_custom_call.1} parent=103 // pred_check
        %p1529 = pneg %p436
      $region106: #{tpu_custom_call.1} parent=103 // pred_check_branch
        %1531 = sbr.rel (%p1529) target = $region108
      $region107: #{tpu_custom_call.1} parent=103 // pred_region
        %p1532 = scmp.lt.s32.totalorder %s30, 6
        %s1533 = scalar_select %p1532, %s30, 6
        %s1534 = smul.addr %s1533, 2
        %s1535 = smul.addr %s1534, 8
        %s1536 = scalar_lea.vmem %s18, %s1535
      $region108: #{tpu_custom_call.1} parent=103 // pred_fallthru
        _
    $region104: #{tpu_custom_call.1} parent=5 // pred_fallthru
      _
  $region6: #{tpu_custom_call.1} parent=0 // loop_footer
    %s28 = sadd.s32 1, %s24
  $region7: #{tpu_custom_call.1} parent=0 // loop_footer_branch
    %23 = sbr.rel target = $region3
  $region8: #{tpu_custom_call.1} parent=0 // loop_exit
    _

</llo_original>
